<compile_context>
chip_gen: v7x
topology: tpu7x:2x2x1
jax: 0.10.0
libtpu: 0.0.40
codegen_flags: <defaults>
</compile_context>

<pallas_src>
import jax
import jax.numpy as jnp
from jax.experimental import pallas as pl
from jax.experimental.pallas import tpu as pltpu


# ----------------------------- Pallas kernel -------------------------------

def _adaptive_attention_kernel(
        sp_ref, dec_ref, st_ref,
        wv_ref, bv_ref,
        ws_ref, bs_ref,
        wsa_ref, bsa_ref,
        wh_ref, bh_ref,
        wha_ref, bha_ref,
        wal_ref, bal_ref,
        wc_ref, bc_ref,
        out_ref, attw_ref):
    f32 = jnp.float32
    num_pixels = sp_ref.shape[1]

    x = sp_ref[0]                              # (P, H) float32
    dec = dec_ref[0]                           # (1, H)
    st = st_ref[0]                             # (1, H)

    # visual_attn = v_att(spatial_image): the only matmul scaling with P.
    # bf16 operands on the MXU, float32 accumulation.
    visual_attn = jnp.dot(x.astype(jnp.bfloat16), wv_ref[...],
                          preferred_element_type=f32) + bv_ref[...]        # (P, A)

    # sentinel_affine = relu(sen_affine(st)); sentinel_attn = sen_att(...)
    sen_aff = jnp.dot(st, ws_ref[...], preferred_element_type=f32) + bs_ref[...]
    sen_aff = jnp.maximum(sen_aff, 0.0)                                     # (1, H)
    sen_attn = (jnp.dot(sen_aff, wsa_ref[...], preferred_element_type=f32)
                + bsa_ref[...])                                             # (1, A)

    # hidden_affine = tanh(h_affine(decoder_out)); hidden_attn = h_att(...)
    hid_aff = jnp.tanh(jnp.dot(dec, wh_ref[...], preferred_element_type=f32)
                       + bh_ref[...])                                       # (1, H)
    hid_attn = (jnp.dot(hid_aff, wha_ref[...], preferred_element_type=f32)
                + bha_ref[...])                                             # (1, A)

    # attention = tanh(attended_features + hidden_resized); alpha = alphas(attention)
    att_pix = jnp.tanh(visual_attn + hid_attn)                              # (P, A)
    att_sen = jnp.tanh(sen_attn + hid_attn)                                 # (1, A)
    alpha_pix = (jnp.dot(att_pix, wal_ref[...], preferred_element_type=f32)
                 + bal_ref[...])                                            # (P, 1)
    alpha_sen = (jnp.dot(att_sen, wal_ref[...], preferred_element_type=f32)
                 + bal_ref[...])                                            # (1, 1)

    # softmax over the P + 1 logits (pixels first, sentinel last)
    m = jnp.maximum(jnp.max(alpha_pix, axis=0, keepdims=True), alpha_sen)   # (1, 1)
    e_pix = jnp.exp(alpha_pix - m)                                          # (P, 1)
    e_sen = jnp.exp(alpha_sen - m)                                          # (1, 1)
    denom = jnp.sum(e_pix, axis=0, keepdims=True) + e_sen                   # (1, 1)
    inv = 1.0 / denom
    w_pix = e_pix * inv                                                     # (P, 1)
    w_sen = e_sen * inv                                                     # (1, 1)

    # context = sum_k att_weights[k] * concat_features[k]
    context = jnp.sum(x * w_pix, axis=0, keepdims=True) + w_sen * sen_aff   # (1, H)

    # out_l = tanh(context_hidden(context + hidden_affine))
    out = jnp.tanh(jnp.dot(context + hid_aff, wc_ref[...],
                           preferred_element_type=f32) + bc_ref[...])       # (1, H)

    out_ref[0] = out
    attw_ref[0, 0:num_pixels, :] = w_pix
    attw_ref[0, num_pixels:num_pixels + 1, :] = w_sen


# ----------------------------- wrapper --------------------------------------

def adaptive_attention_forward(params, spatial_image, decoder_out, st):
    """Returns (out_l, att_weights, beta_value) matching the PyTorch module."""
    B, P, H = spatial_image.shape
    _ = params['v_att']['w'].shape[1]  # att_dim

    sp = spatial_image.astype(jnp.float32)
    dec3 = decoder_out.astype(jnp.float32).reshape(B, 1, H)
    st3 = st.astype(jnp.float32).reshape(B, 1, H)

    def w_f32(name):
        return params[name]['w'].astype(jnp.float32)

    def b_row(name):
        b = params[name]['b']
        return b.astype(jnp.float32).reshape(1, b.shape[0])

    weight_args = (
        params['v_att']['w'].astype(jnp.bfloat16), b_row('v_att'),   # bf16 MXU operand
        w_f32('sen_affine'), b_row('sen_affine'),
        w_f32('sen_att'), b_row('sen_att'),
        w_f32('h_affine'), b_row('h_affine'),
        w_f32('h_att'), b_row('h_att'),
        w_f32('alphas'), b_row('alphas'),
        w_f32('context_hidden'), b_row('context_hidden'),
    )

    def batched3(shape):
        return pl.BlockSpec((1,) + tuple(shape[1:]), lambda b: (b, 0, 0))

    def whole2(arr):
        return pl.BlockSpec(arr.shape, lambda b: (0, 0))

    in_specs = [batched3(sp.shape), batched3(dec3.shape), batched3(st3.shape)]
    in_specs += [whole2(a) for a in weight_args]

    out_shape = (jax.ShapeDtypeStruct((B, 1, H), jnp.float32),
                 jax.ShapeDtypeStruct((B, P + 1, 1), jnp.float32))
    out_specs = [pl.BlockSpec((1, 1, H), lambda b: (b, 0, 0)),
                 pl.BlockSpec((1, P + 1, 1), lambda b: (b, 0, 0))]

    out3, attw3 = pl.pallas_call(
        _adaptive_attention_kernel,
        out_shape=out_shape,
        grid_spec=pltpu.PrefetchScalarGridSpec(
            num_scalar_prefetch=0,
            grid=(B,),
            in_specs=in_specs,
            out_specs=out_specs,
        ),
        compiler_params=pltpu.CompilerParams(
            dimension_semantics=("parallel",)),
    )(sp, dec3, st3, *weight_args)

    out_l = out3.reshape(B, H)
    att_weights = attw3.reshape(B, P + 1)
    beta_value = att_weights[:, -1:]
    return out_l, att_weights, beta_value


# ----------------------------- params & reference ---------------------------

def init_params(key, hidden_size, att_dim):
    def linear(k, fin, fout):
        kw, kb = jax.random.split(k)
        scale = fin ** -0.5
        return dict(
            w=jax.random.uniform(kw, (fin, fout), jnp.float32, -scale, scale),
            b=jax.random.uniform(kb, (fout,), jnp.float32, -scale, scale))

    keys = jax.random.split(key, 7)
    return {
        'sen_affine': linear(keys[0], hidden_size, hidden_size),
        'sen_att': linear(keys[1], hidden_size, att_dim),
        'h_affine': linear(keys[2], hidden_size, hidden_size),
        'h_att': linear(keys[3], hidden_size, att_dim),
        'v_att': linear(keys[4], hidden_size, att_dim),
        'alphas': linear(keys[5], att_dim, 1),
        'context_hidden': linear(keys[6], hidden_size, hidden_size),
    }


def reference_forward(params, spatial_image, decoder_out, st):
    """Pure-JAX f32 replica of the PyTorch forward (for correctness check)."""
    def lin(name, x):
        p = params[name]
        return x @ p['w'] + p['b']

    visual_attn = lin('v_att', spatial_image)                       # (B,P,A)
    sentinel_affine = jax.nn.relu(lin('sen_affine', st))            # (B,H)
    sentinel_attn = lin('sen_att', sentinel_affine)                 # (B,A)
    hidden_affine = jnp.tanh(lin('h_affine', decoder_out))          # (B,H)
    hidden_attn = lin('h_att', hidden_affine)                       # (B,A)
    concat_features = jnp.concatenate(
        [spatial_image, sentinel_affine[:, None, :]], axis=1)       # (B,P+1,H)
    attended_features = jnp.concatenate(
        [visual_attn, sentinel_attn[:, None, :]], axis=1)           # (B,P+1,A)
    attention = jnp.tanh(attended_features + hidden_attn[:, None, :])
    alpha = (attention @ params['alphas']['w']
             + params['alphas']['b'])[..., 0]                       # (B,P+1)
    att_weights = jax.nn.softmax(alpha, axis=1)
    context = jnp.sum(concat_features * att_weights[..., None], axis=1)
    beta_value = att_weights[:, -1:]
    out_l = jnp.tanh(lin('context_hidden', context + hidden_affine))
    return out_l, att_weights, beta_value


# ----------------------------- main ------------------------------------------

if __name__ == "__main__":
    hidden_size, att_dim = 256, 128        # lane-dense (multiples of 128)
    batch, num_pixels = 4, 64              # e.g. 8x8 spatial feature map

    key = jax.random.PRNGKey(0)
    k_p, k_sp, k_dec, k_st = jax.random.split(key, 4)
    params = init_params(k_p, hidden_size, att_dim)
    spatial_image = jax.random.normal(
        k_sp, (batch, num_pixels, hidden_size), jnp.float32)
    decoder_out = jax.random.normal(k_dec, (batch, hidden_size), jnp.float32)
    st = jax.random.normal(k_st, (batch, hidden_size), jnp.float32)

    out_l, att_weights, beta_value = adaptive_attention_forward(
        params, spatial_image, decoder_out, st)
    jax.block_until_ready((out_l, att_weights, beta_value))

    assert out_l.shape == (batch, hidden_size)
    assert att_weights.shape == (batch, num_pixels + 1)
    assert beta_value.shape == (batch, 1)

    ref_out, ref_w, ref_beta = reference_forward(
        params, spatial_image, decoder_out, st)
    assert bool(jnp.all(jnp.isfinite(out_l)))
    assert bool(jnp.allclose(att_weights, ref_w, atol=1e-3, rtol=1e-2)), \
        float(jnp.max(jnp.abs(att_weights - ref_w)))
    assert bool(jnp.allclose(beta_value, ref_beta, atol=1e-3, rtol=1e-2))
    assert bool(jnp.allclose(out_l, ref_out, atol=3e-2, rtol=3e-2)), \
        float(jnp.max(jnp.abs(out_l - ref_out)))
    assert bool(jnp.allclose(jnp.sum(att_weights, axis=1), 1.0, atol=1e-4))
    print("KERNEL_OK")
</pallas_src>

<mosaic_0001>
module attributes {stable_mosaic.version = 11 : i64} {
  func.func @_adaptive_attention_kernel(%arg0: i32, %arg1: memref<1x64x256xf32, #tpu.memory_space<vmem>>, %arg2: memref<1x1x256xf32, #tpu.memory_space<vmem>>, %arg3: memref<1x1x256xf32, #tpu.memory_space<vmem>>, %arg4: memref<256x128xbf16, #tpu.memory_space<vmem>>, %arg5: memref<1x128xf32, #tpu.memory_space<vmem>>, %arg6: memref<256x256xf32, #tpu.memory_space<vmem>>, %arg7: memref<1x256xf32, #tpu.memory_space<vmem>>, %arg8: memref<256x128xf32, #tpu.memory_space<vmem>>, %arg9: memref<1x128xf32, #tpu.memory_space<vmem>>, %arg10: memref<256x256xf32, #tpu.memory_space<vmem>>, %arg11: memref<1x256xf32, #tpu.memory_space<vmem>>, %arg12: memref<256x128xf32, #tpu.memory_space<vmem>>, %arg13: memref<1x128xf32, #tpu.memory_space<vmem>>, %arg14: memref<128x1xf32, #tpu.memory_space<vmem>>, %arg15: memref<1x1xf32, #tpu.memory_space<vmem>>, %arg16: memref<256x256xf32, #tpu.memory_space<vmem>>, %arg17: memref<1x256xf32, #tpu.memory_space<vmem>>, %arg18: memref<1x1x256xf32, #tpu.memory_space<vmem>>, %arg19: memref<1x65x1xf32, #tpu.memory_space<vmem>>) attributes {dimension_semantics = [#tpu.dimension_semantics<parallel>], iteration_bounds = array<i64: 4>, scalar_prefetch = 0 : i64, scratch_operands = 0 : i64, tpu.core_type = #tpu.core_type<tc>, window_params = [{transform_indices = @transform_0, window_bounds = array<i64: 1, 64, 256>}, {transform_indices = @transform_1, window_bounds = array<i64: 1, 1, 256>}, {transform_indices = @transform_2, window_bounds = array<i64: 1, 1, 256>}, {pipeline_mode = #tpu.pipeline_mode<synchronous>, transform_indices = @transform_3, window_bounds = array<i64: 256, 128>}, {pipeline_mode = #tpu.pipeline_mode<synchronous>, transform_indices = @transform_4, window_bounds = array<i64: 1, 128>}, {pipeline_mode = #tpu.pipeline_mode<synchronous>, transform_indices = @transform_5, window_bounds = array<i64: 256, 256>}, {pipeline_mode = #tpu.pipeline_mode<synchronous>, transform_indices = @transform_6, window_bounds = array<i64: 1, 256>}, {pipeline_mode = #tpu.pipeline_mode<synchronous>, transform_indices = @transform_7, window_bounds = array<i64: 256, 128>}, {pipeline_mode = #tpu.pipeline_mode<synchronous>, transform_indices = @transform_8, window_bounds = array<i64: 1, 128>}, {pipeline_mode = #tpu.pipeline_mode<synchronous>, transform_indices = @transform_9, window_bounds = array<i64: 256, 256>}, {pipeline_mode = #tpu.pipeline_mode<synchronous>, transform_indices = @transform_10, window_bounds = array<i64: 1, 256>}, {pipeline_mode = #tpu.pipeline_mode<synchronous>, transform_indices = @transform_11, window_bounds = array<i64: 256, 128>}, {pipeline_mode = #tpu.pipeline_mode<synchronous>, transform_indices = @transform_12, window_bounds = array<i64: 1, 128>}, {pipeline_mode = #tpu.pipeline_mode<synchronous>, transform_indices = @transform_13, window_bounds = array<i64: 128, 1>}, {pipeline_mode = #tpu.pipeline_mode<synchronous>, transform_indices = @transform_14, window_bounds = array<i64: 1, 1>}, {pipeline_mode = #tpu.pipeline_mode<synchronous>, transform_indices = @transform_15, window_bounds = array<i64: 256, 256>}, {pipeline_mode = #tpu.pipeline_mode<synchronous>, transform_indices = @transform_16, window_bounds = array<i64: 1, 256>}, {transform_indices = @transform_17, window_bounds = array<i64: 1, 1, 256>}, {transform_indices = @transform_18, window_bounds = array<i64: 1, 65, 1>}]} {
    %c0 = arith.constant 0 : index
    %c0_0 = arith.constant 0 : index
    %c0_1 = arith.constant 0 : index
    %0 = vector.load %arg1[%c0, %c0_0, %c0_1] : memref<1x64x256xf32, #tpu.memory_space<vmem>>, vector<1x64x256xf32>
    %1 = vector.shape_cast %0 : vector<1x64x256xf32> to vector<64x256xf32>
    %c0_2 = arith.constant 0 : index
    %c0_3 = arith.constant 0 : index
    %c0_4 = arith.constant 0 : index
    %2 = vector.load %arg2[%c0_2, %c0_3, %c0_4] : memref<1x1x256xf32, #tpu.memory_space<vmem>>, vector<1x1x256xf32>
    %3 = vector.shape_cast %2 : vector<1x1x256xf32> to vector<1x256xf32>
    %c0_5 = arith.constant 0 : index
    %c0_6 = arith.constant 0 : index
    %c0_7 = arith.constant 0 : index
    %4 = vector.load %arg3[%c0_5, %c0_6, %c0_7] : memref<1x1x256xf32, #tpu.memory_space<vmem>>, vector<1x1x256xf32>
    %5 = vector.shape_cast %4 : vector<1x1x256xf32> to vector<1x256xf32>
    %6 = arith.truncf %1 : vector<64x256xf32> to vector<64x256xbf16>
    %c0_8 = arith.constant 0 : index
    %c0_9 = arith.constant 0 : index
    %7 = vector.load %arg4[%c0_8, %c0_9] : memref<256x128xbf16, #tpu.memory_space<vmem>>, vector<256x128xbf16>
    %cst = arith.constant dense<0.000000e+00> : vector<64x128xf32>
    %8 = tpu.matmul %6, %7, %cst {dimension_numbers = #tpu.dot_dimension_numbers<[1], [0], [0], [1], [0, 0, 1, 1], [], []>} : vector<64x256xbf16>, vector<256x128xbf16>, vector<64x128xf32> -> vector<64x128xf32>
    %c0_10 = arith.constant 0 : index
    %c0_11 = arith.constant 0 : index
    %9 = vector.load %arg5[%c0_10, %c0_11] : memref<1x128xf32, #tpu.memory_space<vmem>>, vector<1x128xf32>
    %10 = vector.broadcast %9 : vector<1x128xf32> to vector<64x128xf32>
    %11 = arith.addf %8, %10 : vector<64x128xf32>
    %c0_12 = arith.constant 0 : index
    %c0_13 = arith.constant 0 : index
    %12 = vector.load %arg6[%c0_12, %c0_13] : memref<256x256xf32, #tpu.memory_space<vmem>>, vector<256x256xf32>
    %cst_14 = arith.constant dense<0.000000e+00> : vector<1x256xf32>
    %13 = tpu.matmul %5, %12, %cst_14 {dimension_numbers = #tpu.dot_dimension_numbers<[1], [0], [0], [1], [0, 0, 1, 1], [], []>} : vector<1x256xf32>, vector<256x256xf32>, vector<1x256xf32> -> vector<1x256xf32>
    %c0_15 = arith.constant 0 : index
    %c0_16 = arith.constant 0 : index
    %14 = vector.load %arg7[%c0_15, %c0_16] : memref<1x256xf32, #tpu.memory_space<vmem>>, vector<1x256xf32>
    %15 = arith.addf %13, %14 : vector<1x256xf32>
    %cst_17 = arith.constant 0.000000e+00 : f32
    %16 = vector.broadcast %cst_17 : f32 to vector<1x256xf32>
    %17 = arith.maximumf %15, %16 : vector<1x256xf32>
    %c0_18 = arith.constant 0 : index
    %c0_19 = arith.constant 0 : index
    %18 = vector.load %arg8[%c0_18, %c0_19] : memref<256x128xf32, #tpu.memory_space<vmem>>, vector<256x128xf32>
    %cst_20 = arith.constant dense<0.000000e+00> : vector<1x128xf32>
    %19 = tpu.matmul %17, %18, %cst_20 {dimension_numbers = #tpu.dot_dimension_numbers<[1], [0], [0], [1], [0, 0, 1, 1], [], []>} : vector<1x256xf32>, vector<256x128xf32>, vector<1x128xf32> -> vector<1x128xf32>
    %c0_21 = arith.constant 0 : index
    %c0_22 = arith.constant 0 : index
    %20 = vector.load %arg9[%c0_21, %c0_22] : memref<1x128xf32, #tpu.memory_space<vmem>>, vector<1x128xf32>
    %21 = arith.addf %19, %20 : vector<1x128xf32>
    %c0_23 = arith.constant 0 : index
    %c0_24 = arith.constant 0 : index
    %22 = vector.load %arg10[%c0_23, %c0_24] : memref<256x256xf32, #tpu.memory_space<vmem>>, vector<256x256xf32>
    %cst_25 = arith.constant dense<0.000000e+00> : vector<1x256xf32>
    %23 = tpu.matmul %3, %22, %cst_25 {dimension_numbers = #tpu.dot_dimension_numbers<[1], [0], [0], [1], [0, 0, 1, 1], [], []>} : vector<1x256xf32>, vector<256x256xf32>, vector<1x256xf32> -> vector<1x256xf32>
    %c0_26 = arith.constant 0 : index
    %c0_27 = arith.constant 0 : index
    %24 = vector.load %arg11[%c0_26, %c0_27] : memref<1x256xf32, #tpu.memory_space<vmem>>, vector<1x256xf32>
    %25 = arith.addf %23, %24 : vector<1x256xf32>
    %26 = math.tanh %25 : vector<1x256xf32>
    %c0_28 = arith.constant 0 : index
    %c0_29 = arith.constant 0 : index
    %27 = vector.load %arg12[%c0_28, %c0_29] : memref<256x128xf32, #tpu.memory_space<vmem>>, vector<256x128xf32>
    %cst_30 = arith.constant dense<0.000000e+00> : vector<1x128xf32>
    %28 = tpu.matmul %26, %27, %cst_30 {dimension_numbers = #tpu.dot_dimension_numbers<[1], [0], [0], [1], [0, 0, 1, 1], [], []>} : vector<1x256xf32>, vector<256x128xf32>, vector<1x128xf32> -> vector<1x128xf32>
    %c0_31 = arith.constant 0 : index
    %c0_32 = arith.constant 0 : index
    %29 = vector.load %arg13[%c0_31, %c0_32] : memref<1x128xf32, #tpu.memory_space<vmem>>, vector<1x128xf32>
    %30 = arith.addf %28, %29 : vector<1x128xf32>
    %31 = vector.broadcast %30 : vector<1x128xf32> to vector<64x128xf32>
    %32 = arith.addf %11, %31 : vector<64x128xf32>
    %33 = math.tanh %32 : vector<64x128xf32>
    %34 = arith.addf %21, %30 : vector<1x128xf32>
    %35 = math.tanh %34 : vector<1x128xf32>
    %c0_33 = arith.constant 0 : index
    %c0_34 = arith.constant 0 : index
    %36 = vector.load %arg14[%c0_33, %c0_34] : memref<128x1xf32, #tpu.memory_space<vmem>>, vector<128x1xf32>
    %cst_35 = arith.constant dense<0.000000e+00> : vector<64x1xf32>
    %37 = tpu.matmul %33, %36, %cst_35 {dimension_numbers = #tpu.dot_dimension_numbers<[1], [0], [0], [1], [0, 0, 1, 1], [], []>} : vector<64x128xf32>, vector<128x1xf32>, vector<64x1xf32> -> vector<64x1xf32>
    %c0_36 = arith.constant 0 : index
    %c0_37 = arith.constant 0 : index
    %38 = vector.load %arg15[%c0_36, %c0_37] : memref<1x1xf32, #tpu.memory_space<vmem>>, vector<1x1xf32>
    %39 = vector.broadcast %38 : vector<1x1xf32> to vector<64x1xf32>
    %40 = arith.addf %37, %39 : vector<64x1xf32>
    %c0_38 = arith.constant 0 : index
    %c0_39 = arith.constant 0 : index
    %41 = vector.load %arg14[%c0_38, %c0_39] : memref<128x1xf32, #tpu.memory_space<vmem>>, vector<128x1xf32>
    %cst_40 = arith.constant dense<0.000000e+00> : vector<1x1xf32>
    %42 = tpu.matmul %35, %41, %cst_40 {dimension_numbers = #tpu.dot_dimension_numbers<[1], [0], [0], [1], [0, 0, 1, 1], [], []>} : vector<1x128xf32>, vector<128x1xf32>, vector<1x1xf32> -> vector<1x1xf32>
    %c0_41 = arith.constant 0 : index
    %c0_42 = arith.constant 0 : index
    %43 = vector.load %arg15[%c0_41, %c0_42] : memref<1x1xf32, #tpu.memory_space<vmem>>, vector<1x1xf32>
    %44 = arith.addf %42, %43 : vector<1x1xf32>
    %cst_43 = arith.constant dense<0xFF800000> : vector<1xf32>
    %45 = vector.multi_reduction <maximumf>, %40, %cst_43 [0] : vector<64x1xf32> to vector<1xf32>
    %46 = vector.shape_cast %45 : vector<1xf32> to vector<1x1xf32>
    %47 = arith.maximumf %46, %44 : vector<1x1xf32>
    %48 = vector.broadcast %47 : vector<1x1xf32> to vector<64x1xf32>
    %49 = arith.subf %40, %48 : vector<64x1xf32>
    %50 = math.exp %49 : vector<64x1xf32>
    %51 = arith.subf %44, %47 : vector<1x1xf32>
    %52 = math.exp %51 : vector<1x1xf32>
    %cst_44 = arith.constant dense<0.000000e+00> : vector<1xf32>
    %53 = vector.multi_reduction <add>, %50, %cst_44 [0] : vector<64x1xf32> to vector<1xf32>
    %54 = vector.shape_cast %53 : vector<1xf32> to vector<1x1xf32>
    %55 = arith.addf %54, %52 : vector<1x1xf32>
    %cst_45 = arith.constant 1.000000e+00 : f32
    %56 = vector.broadcast %cst_45 : f32 to vector<1x1xf32>
    %57 = arith.divf %56, %55 : vector<1x1xf32>
    %58 = vector.broadcast %57 : vector<1x1xf32> to vector<64x1xf32>
    %59 = arith.mulf %50, %58 : vector<64x1xf32>
    %60 = arith.mulf %52, %57 : vector<1x1xf32>
    %61 = vector.broadcast %59 : vector<64x1xf32> to vector<64x256xf32>
    %62 = arith.mulf %1, %61 : vector<64x256xf32>
    %cst_46 = arith.constant dense<0.000000e+00> : vector<256xf32>
    %63 = vector.multi_reduction <add>, %62, %cst_46 [0] : vector<64x256xf32> to vector<256xf32>
    %64 = vector.shape_cast %63 : vector<256xf32> to vector<1x256xf32>
    %65 = vector.broadcast %60 : vector<1x1xf32> to vector<1x256xf32>
    %66 = arith.mulf %65, %17 : vector<1x256xf32>
    %67 = arith.addf %64, %66 : vector<1x256xf32>
    %68 = arith.addf %67, %26 : vector<1x256xf32>
    %c0_47 = arith.constant 0 : index
    %c0_48 = arith.constant 0 : index
    %69 = vector.load %arg16[%c0_47, %c0_48] : memref<256x256xf32, #tpu.memory_space<vmem>>, vector<256x256xf32>
    %cst_49 = arith.constant dense<0.000000e+00> : vector<1x256xf32>
    %70 = tpu.matmul %68, %69, %cst_49 {dimension_numbers = #tpu.dot_dimension_numbers<[1], [0], [0], [1], [0, 0, 1, 1], [], []>} : vector<1x256xf32>, vector<256x256xf32>, vector<1x256xf32> -> vector<1x256xf32>
    %c0_50 = arith.constant 0 : index
    %c0_51 = arith.constant 0 : index
    %71 = vector.load %arg17[%c0_50, %c0_51] : memref<1x256xf32, #tpu.memory_space<vmem>>, vector<1x256xf32>
    %72 = arith.addf %70, %71 : vector<1x256xf32>
    %73 = math.tanh %72 : vector<1x256xf32>
    %c0_52 = arith.constant 0 : index
    %c0_53 = arith.constant 0 : index
    %c0_54 = arith.constant 0 : index
    %74 = vector.load %arg18[%c0_52, %c0_53, %c0_54] : memref<1x1x256xf32, #tpu.memory_space<vmem>>, vector<1x1x256xf32>
    %75 = vector.shape_cast %74 : vector<1x1x256xf32> to vector<1x256xf32>
    %76 = vector.shape_cast %73 : vector<1x256xf32> to vector<1x1x256xf32>
    tpu.vector_store %arg18[%c0_52, %c0_53, %c0_54], %76 {strides = array<i32>} : memref<1x1x256xf32, #tpu.memory_space<vmem>>, vector<1x1x256xf32>,
    %c0_55 = arith.constant 0 : index
    %c0_56 = arith.constant 0 : index
    %c0_57 = arith.constant 0 : index
    %77 = vector.load %arg19[%c0_55, %c0_56, %c0_57] : memref<1x65x1xf32, #tpu.memory_space<vmem>>, vector<1x64x1xf32>
    %78 = vector.shape_cast %77 : vector<1x64x1xf32> to vector<64x1xf32>
    %79 = vector.shape_cast %59 : vector<64x1xf32> to vector<1x64x1xf32>
    tpu.vector_store %arg19[%c0_55, %c0_56, %c0_57], %79 {strides = array<i32>} : memref<1x65x1xf32, #tpu.memory_space<vmem>>, vector<1x64x1xf32>,
    %c0_58 = arith.constant 0 : index
    %c64 = arith.constant 64 : index
    %c0_59 = arith.constant 0 : index
    %80 = vector.load %arg19[%c0_58, %c64, %c0_59] : memref<1x65x1xf32, #tpu.memory_space<vmem>>, vector<1x1x1xf32>
    %81 = vector.shape_cast %80 : vector<1x1x1xf32> to vector<1x1xf32>
    %82 = vector.shape_cast %60 : vector<1x1xf32> to vector<1x1x1xf32>
    tpu.vector_store %arg19[%c0_58, %c64, %c0_59], %82 {strides = array<i32>} : memref<1x65x1xf32, #tpu.memory_space<vmem>>, vector<1x1x1xf32>,
    return
  }
  func.func @transform_0(%arg0: i32) -> (i32, i32, i32) {
    %c0_i32 = arith.constant 0 : i32
    %c0_i32_0 = arith.constant 0 : i32
    %c0_i32_1 = arith.constant 0 : i32
    return %arg0, %c0_i32, %c0_i32_0 : i32, i32, i32
  }
  func.func @transform_1(%arg0: i32) -> (i32, i32, i32) {
    %c0_i32 = arith.constant 0 : i32
    %c0_i32_0 = arith.constant 0 : i32
    %c0_i32_1 = arith.constant 0 : i32
    return %arg0, %c0_i32, %c0_i32_0 : i32, i32, i32
  }
  func.func @transform_2(%arg0: i32) -> (i32, i32, i32) {
    %c0_i32 = arith.constant 0 : i32
    %c0_i32_0 = arith.constant 0 : i32
    %c0_i32_1 = arith.constant 0 : i32
    return %arg0, %c0_i32, %c0_i32_0 : i32, i32, i32
  }
  func.func @transform_3(%arg0: i32) -> (i32, i32) {
    %c0_i32 = arith.constant 0 : i32
    %c0_i32_0 = arith.constant 0 : i32
    %c0_i32_1 = arith.constant 0 : i32
    return %c0_i32, %c0_i32_0 : i32, i32
  }
  func.func @transform_4(%arg0: i32) -> (i32, i32) {
    %c0_i32 = arith.constant 0 : i32
    %c0_i32_0 = arith.constant 0 : i32
    %c0_i32_1 = arith.constant 0 : i32
    return %c0_i32, %c0_i32_0 : i32, i32
  }
  func.func @transform_5(%arg0: i32) -> (i32, i32) {
    %c0_i32 = arith.constant 0 : i32
    %c0_i32_0 = arith.constant 0 : i32
    %c0_i32_1 = arith.constant 0 : i32
    return %c0_i32, %c0_i32_0 : i32, i32
  }
  func.func @transform_6(%arg0: i32) -> (i32, i32) {
    %c0_i32 = arith.constant 0 : i32
    %c0_i32_0 = arith.constant 0 : i32
    %c0_i32_1 = arith.constant 0 : i32
    return %c0_i32, %c0_i32_0 : i32, i32
  }
  func.func @transform_7(%arg0: i32) -> (i32, i32) {
    %c0_i32 = arith.constant 0 : i32
    %c0_i32_0 = arith.constant 0 : i32
    %c0_i32_1 = arith.constant 0 : i32
    return %c0_i32, %c0_i32_0 : i32, i32
  }
  func.func @transform_8(%arg0: i32) -> (i32, i32) {
    %c0_i32 = arith.constant 0 : i32
    %c0_i32_0 = arith.constant 0 : i32
    %c0_i32_1 = arith.constant 0 : i32
    return %c0_i32, %c0_i32_0 : i32, i32
  }
  func.func @transform_9(%arg0: i32) -> (i32, i32) {
    %c0_i32 = arith.constant 0 : i32
    %c0_i32_0 = arith.constant 0 : i32
    %c0_i32_1 = arith.constant 0 : i32
    return %c0_i32, %c0_i32_0 : i32, i32
  }
  func.func @transform_10(%arg0: i32) -> (i32, i32) {
    %c0_i32 = arith.constant 0 : i32
    %c0_i32_0 = arith.constant 0 : i32
    %c0_i32_1 = arith.constant 0 : i32
    return %c0_i32, %c0_i32_0 : i32, i32
  }
  func.func @transform_11(%arg0: i32) -> (i32, i32) {
    %c0_i32 = arith.constant 0 : i32
    %c0_i32_0 = arith.constant 0 : i32
    %c0_i32_1 = arith.constant 0 : i32
    return %c0_i32, %c0_i32_0 : i32, i32
  }
  func.func @transform_12(%arg0: i32) -> (i32, i32) {
    %c0_i32 = arith.constant 0 : i32
    %c0_i32_0 = arith.constant 0 : i32
    %c0_i32_1 = arith.constant 0 : i32
    return %c0_i32, %c0_i32_0 : i32, i32
  }
  func.func @transform_13(%arg0: i32) -> (i32, i32) {
    %c0_i32 = arith.constant 0 : i32
    %c0_i32_0 = arith.constant 0 : i32
    %c0_i32_1 = arith.constant 0 : i32
    return %c0_i32, %c0_i32_0 : i32, i32
  }
  func.func @transform_14(%arg0: i32) -> (i32, i32) {
    %c0_i32 = arith.constant 0 : i32
    %c0_i32_0 = arith.constant 0 : i32
    %c0_i32_1 = arith.constant 0 : i32
    return %c0_i32, %c0_i32_0 : i32, i32
  }
  func.func @transform_15(%arg0: i32) -> (i32, i32) {
    %c0_i32 = arith.constant 0 : i32
    %c0_i32_0 = arith.constant 0 : i32
    %c0_i32_1 = arith.constant 0 : i32
    return %c0_i32, %c0_i32_0 : i32, i32
  }
  func.func @transform_16(%arg0: i32) -> (i32, i32) {
    %c0_i32 = arith.constant 0 : i32
    %c0_i32_0 = arith.constant 0 : i32
    %c0_i32_1 = arith.constant 0 : i32
    return %c0_i32, %c0_i32_0 : i32, i32
  }
  func.func @transform_17(%arg0: i32) -> (i32, i32, i32) {
    %c0_i32 = arith.constant 0 : i32
    %c0_i32_0 = arith.constant 0 : i32
    %c0_i32_1 = arith.constant 0 : i32
    return %arg0, %c0_i32, %c0_i32_0 : i32, i32, i32
  }
  func.func @transform_18(%arg0: i32) -> (i32, i32, i32) {
    %c0_i32 = arith.constant 0 : i32
    %c0_i32_0 = arith.constant 0 : i32
    %c0_i32_1 = arith.constant 0 : i32
    return %arg0, %c0_i32, %c0_i32_0 : i32, i32, i32
  }
}

</mosaic_0001>

<llo_original>
// kernel: tpu_custom_call.1
$region0: #{tpu_custom_call.1}
  #allocation0 [shape = 'u32[]', space=smem, size = 0x4, offset = 0x4, fixed_abs, tag = 'smem constant byte address 0x4 - core index']
  #allocation1 [shape = 'u32[144,128]{1,0:T(1,128)}', space=vmem, size = 0x12000, scoped, tag = 'internal scratch']
  #allocation2 [shape = 'f32[1,1]{1,0:T(1,128)S(1)}', space=vmem, size = 0x200, scoped, tag = 'scoped memory for tpu_custom_call.1']
  %s0 = inlined_call_operand.hbm [shape: f32[4,64,256], index: 0, kind: input, shape index: {}]
  %s1 = inlined_call_operand.vmem [shape: f32[4,1,256], index: 1, kind: input, shape index: {}]
  %s2 = inlined_call_operand.vmem [shape: f32[4,1,256], index: 2, kind: input, shape index: {}]
  %s3 = inlined_call_operand.vmem [shape: bf16[256,128], index: 3, kind: input, shape index: {}]
  %s4 = inlined_call_operand.vmem [shape: f32[1,128], index: 4, kind: input, shape index: {}]
  %s5 = inlined_call_operand.hbm [shape: f32[256,256], index: 5, kind: input, shape index: {}]
  %s6 = inlined_call_operand.vmem [shape: f32[1,256], index: 6, kind: input, shape index: {}]
  %s7 = inlined_call_operand.hbm [shape: f32[256,128], index: 7, kind: input, shape index: {}]
  %s8 = inlined_call_operand.vmem [shape: f32[1,128], index: 8, kind: input, shape index: {}]
  %s9 = inlined_call_operand.hbm [shape: f32[256,256], index: 9, kind: input, shape index: {}]
  %s10 = inlined_call_operand.vmem [shape: f32[1,256], index: 10, kind: input, shape index: {}]
  %s11 = inlined_call_operand.hbm [shape: f32[256,128], index: 11, kind: input, shape index: {}]
  %s12 = inlined_call_operand.vmem [shape: f32[1,128], index: 12, kind: input, shape index: {}]
  %s13 = inlined_call_operand.vmem [shape: f32[128,1], index: 13, kind: input, shape index: {}]
  %s14 = inlined_call_operand.<no memory space> [shape: f32[1,1], index: 14, kind: input, shape index: {}]
  %s15 = inlined_call_operand.hbm [shape: f32[256,256], index: 15, kind: input, shape index: {}]
  %s16 = inlined_call_operand.vmem [shape: f32[1,256], index: 16, kind: input, shape index: {}]
  %s17 = inlined_call_operand.hbm [shape: f32[4,1,256], index: 17, kind: output, shape index: {0}]
  %s18 = inlined_call_operand.vmem [shape: f32[4,65,1], index: 18, kind: output, shape index: {1}]
  %19 = xla_tuple %s17, %s18
  %s20 = sld [smem:[#allocation0]]
  $region133: #{tpu_custom_call.1} parent=0
    _
  %s22 = ssub.s32 1, %s20
  %s23 = scalar_select 0, %s22, %s20
  %v24 = vstv %s14
  %25 = vst [vmem:[#allocation2] sm:$0x1] %v24
  $region1: #{tpu_custom_call.1} parent=0
    #allocation3 [shape = 'u8[131072]{0}', space=vmem, size = 0x20000, scoped, tag = 'input window, operand 0']
    #allocation4 [shape = 's32[2]{0}', space=sflag, size = 0x8, scoped, tag = 'scoped memory for tpu_custom_call.1']
    #allocation5 [shape = 's32[2]{0}', space=sflag, size = 0x8, scoped, tag = 'scoped memory for tpu_custom_call.1']
    #allocation6 [shape = 'u8[262144]{0}', space=vmem, size = 0x40000, scoped, tag = 'input window, operand 5, single buffered']
    #allocation7 [shape = 's32[1]{0}', space=sflag, size = 0x4, scoped, tag = 'scoped memory for tpu_custom_call.1']
    #allocation8 [shape = 'u8[131072]{0}', space=vmem, size = 0x20000, scoped, tag = 'input window, operand 7, single buffered']
    #allocation9 [shape = 'u8[262144]{0}', space=vmem, size = 0x40000, scoped, tag = 'input window, operand 9, single buffered']
    #allocation10 [shape = 's32[1]{0}', space=sflag, size = 0x4, scoped, tag = 'scoped memory for tpu_custom_call.1']
    #allocation11 [shape = 'u8[131072]{0}', space=vmem, size = 0x20000, scoped, tag = 'input window, operand 11, single buffered']
    #allocation12 [shape = 'u8[262144]{0}', space=vmem, size = 0x40000, scoped, tag = 'input window, operand 15, single buffered']
    #allocation13 [shape = 's32[1]{0}', space=sflag, size = 0x4, scoped, tag = 'scoped memory for tpu_custom_call.1']
    #allocation14 [shape = 'u8[2048]{0}', space=vmem, size = 0x800, scoped, tag = 'output window, operand 0']
    %26 = vsyncpa [#allocation4], 0
    %s27 = scalar_lea.sflag [#allocation4], 1
    %28 = vsyncpa %s27, 0
    %29 = vsyncpa [#allocation7], 0
    %30 = vsyncpa [#allocation10], 0
    %31 = vsyncpa [#allocation13], 0
    %32 = vsyncpa [#allocation5], 0
    %s33 = scalar_lea.sflag [#allocation5], 1
    %34 = vsyncpa %s33, 0
    loop: start=0, step=1, limit=6
    $region2: #{tpu_custom_call.1} parent=1 // loop_pre_header
      _
    $region3: #{tpu_custom_call.1} parent=1 // loop_header
      %s36 = sphi 0, %s40
      %p37 = scmp.ge.s32.totalorder %s36, 6
      %s46 = sphi 0, %s48
      %s49 = sphi 0, %s46
      %s50 = sphi 0, %s49
      %s66 = sphi 0, %s50
      %s72 = sphi 0, %s74
      %s75 = sphi 0, %s72
      %s76 = sphi 0, %s75
      %s92 = sphi 0, %s76
      %s98 = sphi 0, %s100
      %s101 = sphi 0, %s98
      %s102 = sphi 0, %s101
      %s118 = sphi 0, %s102
      %s122 = sphi 0, %s122
      %s124 = sphi 0, %s122
      %s125 = sphi 0, %s124
      %s139 = sphi 0, %s125
      %s143 = sphi 0, %s143
      %s145 = sphi 0, %s143
      %s146 = sphi 0, %s145
      %s160 = sphi 0, %s146
      %s164 = sphi 0, %s164
      %s166 = sphi 0, %s164
      %s167 = sphi 0, %s166
      %s181 = sphi 0, %s167
      %s185 = sphi 0, %s185
      %s187 = sphi 0, %s185
      %s188 = sphi 0, %s187
      %s202 = sphi 0, %s188
      %s206 = sphi 0, %s206
      %s208 = sphi 0, %s206
      %s209 = sphi 0, %s208
      %s223 = sphi 0, %s209
      %s227 = sphi 0, %s227
      %s229 = sphi 0, %s227
      %s230 = sphi 0, %s229
      %s244 = sphi 0, %s230
      %s248 = sphi 0, %s248
      %s250 = sphi 0, %s248
      %s251 = sphi 0, %s250
      %s265 = sphi 0, %s251
      %s269 = sphi 0, %s269
      %s271 = sphi 0, %s269
      %s272 = sphi 0, %s271
      %s286 = sphi 0, %s272
      %s290 = sphi 0, %s290
      %s292 = sphi 0, %s290
      %s293 = sphi 0, %s292
      %s307 = sphi 0, %s293
      %s311 = sphi 0, %s311
      %s313 = sphi 0, %s311
      %s314 = sphi 0, %s313
      %s328 = sphi 0, %s314
      %s332 = sphi 0, %s332
      %s334 = sphi 0, %s332
      %s335 = sphi 0, %s334
      %s349 = sphi 0, %s335
      %s353 = sphi 0, %s353
      %s355 = sphi 0, %s353
      %s356 = sphi 0, %s355
      %s370 = sphi 0, %s356
      %s374 = sphi 0, %s374
      %s376 = sphi 0, %s374
      %s377 = sphi 0, %s376
      %s391 = sphi 0, %s377
      %s395 = sphi 0, %s395
      %s397 = sphi 0, %s395
      %s398 = sphi 0, %s397
      %s412 = sphi 0, %s398
      %s418 = sphi 0, %s420
      %s421 = sphi 0, %s418
      %s422 = sphi 0, %s421
      %s438 = sphi 0, %s422
      %s444 = sphi 0, %s446
      %s447 = sphi 0, %s444
      %s448 = sphi 0, %s447
      %s464 = sphi 0, %s448
    $region4: #{tpu_custom_call.1} parent=1 // loop_header_branch
      %39 = sbr.rel (%p37) target = $region8
    $region5: #{tpu_custom_call.1} parent=1 // loop_body
      %s41 = ssub.s32 %s36, 1
      %s42 = ssub.s32 %s36, 2
      %s43 = sadd.s32 %s36, 1
      %s44 = ssub.s32 %s36, %s43
      %p45 = scmp.eq.s32.totalorder %s44, 0
      %s47 = sadd.s32 %s46, 1
      %s48 = scalar_select %p45, %s46, %s47
      %p51 = pneg %p45
      %p52 = scmp.eq.s32.totalorder %s36, 3
      %p53 = por %p51, %p52
      %p54 = scmp.ne.s32.totalorder %s46, %s49
      %p55 = scmp.eq.s32.totalorder %s36, 0
      %p56 = por %p54, %p55
      %p57 = scmp.ne.s32.totalorder %s46, %s49
      %p58 = scmp.eq.s32.totalorder %s41, 3
      %p59 = por %p57, %p58
      %p60 = scmp.ne.s32.totalorder %s49, %s50
      %p61 = scmp.eq.s32.totalorder %s41, 0
      %p62 = por %p60, %p61
      %p63 = scmp.ne.s32.totalorder %s49, %s50
      %p64 = scmp.eq.s32.totalorder %s42, 3
      %p65 = por %p63, %p64
      %p67 = scmp.ne.s32.totalorder %s50, %s66
      %p68 = scmp.eq.s32.totalorder %s42, 0
      %p69 = por %p67, %p68
      %s70 = ssub.s32 %s36, %s43
      %p71 = scmp.eq.s32.totalorder %s70, 0
      %s73 = sadd.s32 %s72, 1
      %s74 = scalar_select %p71, %s72, %s73
      %p77 = pneg %p71
      %p78 = scmp.eq.s32.totalorder %s36, 3
      %p79 = por %p77, %p78
      %p80 = scmp.ne.s32.totalorder %s72, %s75
      %p81 = scmp.eq.s32.totalorder %s36, 0
      %p82 = por %p80, %p81
      %p83 = scmp.ne.s32.totalorder %s72, %s75
      %p84 = scmp.eq.s32.totalorder %s41, 3
      %p85 = por %p83, %p84
      %p86 = scmp.ne.s32.totalorder %s75, %s76
      %p87 = scmp.eq.s32.totalorder %s41, 0
      %p88 = por %p86, %p87
      %p89 = scmp.ne.s32.totalorder %s75, %s76
      %p90 = scmp.eq.s32.totalorder %s42, 3
      %p91 = por %p89, %p90
      %p93 = scmp.ne.s32.totalorder %s76, %s92
      %p94 = scmp.eq.s32.totalorder %s42, 0
      %p95 = por %p93, %p94
      %s96 = ssub.s32 %s36, %s43
      %p97 = scmp.eq.s32.totalorder %s96, 0
      %s99 = sadd.s32 %s98, 1
      %s100 = scalar_select %p97, %s98, %s99
      %p103 = pneg %p97
      %p104 = scmp.eq.s32.totalorder %s36, 3
      %p105 = por %p103, %p104
      %p106 = scmp.ne.s32.totalorder %s98, %s101
      %p107 = scmp.eq.s32.totalorder %s36, 0
      %p108 = por %p106, %p107
      %p109 = scmp.ne.s32.totalorder %s98, %s101
      %p110 = scmp.eq.s32.totalorder %s41, 3
      %p111 = por %p109, %p110
      %p112 = scmp.ne.s32.totalorder %s101, %s102
      %p113 = scmp.eq.s32.totalorder %s41, 0
      %p114 = por %p112, %p113
      %p115 = scmp.ne.s32.totalorder %s101, %s102
      %p116 = scmp.eq.s32.totalorder %s42, 3
      %p117 = por %p115, %p116
      %p119 = scmp.ne.s32.totalorder %s102, %s118
      %p120 = scmp.eq.s32.totalorder %s42, 0
      %p121 = por %p119, %p120
      %s123 = sadd.s32 %s122, 1
      %p126 = scmp.eq.s32.totalorder %s36, 3
      %p127 = scmp.ne.s32.totalorder %s122, %s124
      %p128 = scmp.eq.s32.totalorder %s36, 0
      %p129 = por %p127, %p128
      %p130 = scmp.ne.s32.totalorder %s122, %s124
      %p131 = scmp.eq.s32.totalorder %s41, 3
      %p132 = por %p130, %p131
      %p133 = scmp.ne.s32.totalorder %s124, %s125
      %p134 = scmp.eq.s32.totalorder %s41, 0
      %p135 = por %p133, %p134
      %p136 = scmp.ne.s32.totalorder %s124, %s125
      %p137 = scmp.eq.s32.totalorder %s42, 3
      %p138 = por %p136, %p137
      %p140 = scmp.ne.s32.totalorder %s125, %s139
      %p141 = scmp.eq.s32.totalorder %s42, 0
      %p142 = por %p140, %p141
      %s144 = sadd.s32 %s143, 1
      %p147 = scmp.eq.s32.totalorder %s36, 3
      %p148 = scmp.ne.s32.totalorder %s143, %s145
      %p149 = scmp.eq.s32.totalorder %s36, 0
      %p150 = por %p148, %p149
      %p151 = scmp.ne.s32.totalorder %s143, %s145
      %p152 = scmp.eq.s32.totalorder %s41, 3
      %p153 = por %p151, %p152
      %p154 = scmp.ne.s32.totalorder %s145, %s146
      %p155 = scmp.eq.s32.totalorder %s41, 0
      %p156 = por %p154, %p155
      %p157 = scmp.ne.s32.totalorder %s145, %s146
      %p158 = scmp.eq.s32.totalorder %s42, 3
      %p159 = por %p157, %p158
      %p161 = scmp.ne.s32.totalorder %s146, %s160
      %p162 = scmp.eq.s32.totalorder %s42, 0
      %p163 = por %p161, %p162
      %s165 = sadd.s32 %s164, 1
      %p168 = scmp.eq.s32.totalorder %s36, 3
      %p169 = scmp.ne.s32.totalorder %s164, %s166
      %p170 = scmp.eq.s32.totalorder %s36, 0
      %p171 = por %p169, %p170
      %p172 = scmp.ne.s32.totalorder %s164, %s166
      %p173 = scmp.eq.s32.totalorder %s41, 3
      %p174 = por %p172, %p173
      %p175 = scmp.ne.s32.totalorder %s166, %s167
      %p176 = scmp.eq.s32.totalorder %s41, 0
      %p177 = por %p175, %p176
      %p178 = scmp.ne.s32.totalorder %s166, %s167
      %p179 = scmp.eq.s32.totalorder %s42, 3
      %p180 = por %p178, %p179
      %p182 = scmp.ne.s32.totalorder %s167, %s181
      %p183 = scmp.eq.s32.totalorder %s42, 0
      %p184 = por %p182, %p183
      %s186 = sadd.s32 %s185, 1
      %p189 = scmp.eq.s32.totalorder %s36, 3
      %p190 = scmp.ne.s32.totalorder %s185, %s187
      %p191 = scmp.eq.s32.totalorder %s36, 0
      %p192 = por %p190, %p191
      %p193 = scmp.ne.s32.totalorder %s185, %s187
      %p194 = scmp.eq.s32.totalorder %s41, 3
      %p195 = por %p193, %p194
      %p196 = scmp.ne.s32.totalorder %s187, %s188
      %p197 = scmp.eq.s32.totalorder %s41, 0
      %p198 = por %p196, %p197
      %p199 = scmp.ne.s32.totalorder %s187, %s188
      %p200 = scmp.eq.s32.totalorder %s42, 3
      %p201 = por %p199, %p200
      %p203 = scmp.ne.s32.totalorder %s188, %s202
      %p204 = scmp.eq.s32.totalorder %s42, 0
      %p205 = por %p203, %p204
      %s207 = sadd.s32 %s206, 1
      %p210 = scmp.eq.s32.totalorder %s36, 3
      %p211 = scmp.ne.s32.totalorder %s206, %s208
      %p212 = scmp.eq.s32.totalorder %s36, 0
      %p213 = por %p211, %p212
      %p214 = scmp.ne.s32.totalorder %s206, %s208
      %p215 = scmp.eq.s32.totalorder %s41, 3
      %p216 = por %p214, %p215
      %p217 = scmp.ne.s32.totalorder %s208, %s209
      %p218 = scmp.eq.s32.totalorder %s41, 0
      %p219 = por %p217, %p218
      %p220 = scmp.ne.s32.totalorder %s208, %s209
      %p221 = scmp.eq.s32.totalorder %s42, 3
      %p222 = por %p220, %p221
      %p224 = scmp.ne.s32.totalorder %s209, %s223
      %p225 = scmp.eq.s32.totalorder %s42, 0
      %p226 = por %p224, %p225
      %s228 = sadd.s32 %s227, 1
      %p231 = scmp.eq.s32.totalorder %s36, 3
      %p232 = scmp.ne.s32.totalorder %s227, %s229
      %p233 = scmp.eq.s32.totalorder %s36, 0
      %p234 = por %p232, %p233
      %p235 = scmp.ne.s32.totalorder %s227, %s229
      %p236 = scmp.eq.s32.totalorder %s41, 3
      %p237 = por %p235, %p236
      %p238 = scmp.ne.s32.totalorder %s229, %s230
      %p239 = scmp.eq.s32.totalorder %s41, 0
      %p240 = por %p238, %p239
      %p241 = scmp.ne.s32.totalorder %s229, %s230
      %p242 = scmp.eq.s32.totalorder %s42, 3
      %p243 = por %p241, %p242
      %p245 = scmp.ne.s32.totalorder %s230, %s244
      %p246 = scmp.eq.s32.totalorder %s42, 0
      %p247 = por %p245, %p246
      %s249 = sadd.s32 %s248, 1
      %p252 = scmp.eq.s32.totalorder %s36, 3
      %p253 = scmp.ne.s32.totalorder %s248, %s250
      %p254 = scmp.eq.s32.totalorder %s36, 0
      %p255 = por %p253, %p254
      %p256 = scmp.ne.s32.totalorder %s248, %s250
      %p257 = scmp.eq.s32.totalorder %s41, 3
      %p258 = por %p256, %p257
      %p259 = scmp.ne.s32.totalorder %s250, %s251
      %p260 = scmp.eq.s32.totalorder %s41, 0
      %p261 = por %p259, %p260
      %p262 = scmp.ne.s32.totalorder %s250, %s251
      %p263 = scmp.eq.s32.totalorder %s42, 3
      %p264 = por %p262, %p263
      %p266 = scmp.ne.s32.totalorder %s251, %s265
      %p267 = scmp.eq.s32.totalorder %s42, 0
      %p268 = por %p266, %p267
      %s270 = sadd.s32 %s269, 1
      %p273 = scmp.eq.s32.totalorder %s36, 3
      %p274 = scmp.ne.s32.totalorder %s269, %s271
      %p275 = scmp.eq.s32.totalorder %s36, 0
      %p276 = por %p274, %p275
      %p277 = scmp.ne.s32.totalorder %s269, %s271
      %p278 = scmp.eq.s32.totalorder %s41, 3
      %p279 = por %p277, %p278
      %p280 = scmp.ne.s32.totalorder %s271, %s272
      %p281 = scmp.eq.s32.totalorder %s41, 0
      %p282 = por %p280, %p281
      %p283 = scmp.ne.s32.totalorder %s271, %s272
      %p284 = scmp.eq.s32.totalorder %s42, 3
      %p285 = por %p283, %p284
      %p287 = scmp.ne.s32.totalorder %s272, %s286
      %p288 = scmp.eq.s32.totalorder %s42, 0
      %p289 = por %p287, %p288
      %s291 = sadd.s32 %s290, 1
      %p294 = scmp.eq.s32.totalorder %s36, 3
      %p295 = scmp.ne.s32.totalorder %s290, %s292
      %p296 = scmp.eq.s32.totalorder %s36, 0
      %p297 = por %p295, %p296
      %p298 = scmp.ne.s32.totalorder %s290, %s292
      %p299 = scmp.eq.s32.totalorder %s41, 3
      %p300 = por %p298, %p299
      %p301 = scmp.ne.s32.totalorder %s292, %s293
      %p302 = scmp.eq.s32.totalorder %s41, 0
      %p303 = por %p301, %p302
      %p304 = scmp.ne.s32.totalorder %s292, %s293
      %p305 = scmp.eq.s32.totalorder %s42, 3
      %p306 = por %p304, %p305
      %p308 = scmp.ne.s32.totalorder %s293, %s307
      %p309 = scmp.eq.s32.totalorder %s42, 0
      %p310 = por %p308, %p309
      %s312 = sadd.s32 %s311, 1
      %p315 = scmp.eq.s32.totalorder %s36, 3
      %p316 = scmp.ne.s32.totalorder %s311, %s313
      %p317 = scmp.eq.s32.totalorder %s36, 0
      %p318 = por %p316, %p317
      %p319 = scmp.ne.s32.totalorder %s311, %s313
      %p320 = scmp.eq.s32.totalorder %s41, 3
      %p321 = por %p319, %p320
      %p322 = scmp.ne.s32.totalorder %s313, %s314
      %p323 = scmp.eq.s32.totalorder %s41, 0
      %p324 = por %p322, %p323
      %p325 = scmp.ne.s32.totalorder %s313, %s314
      %p326 = scmp.eq.s32.totalorder %s42, 3
      %p327 = por %p325, %p326
      %p329 = scmp.ne.s32.totalorder %s314, %s328
      %p330 = scmp.eq.s32.totalorder %s42, 0
      %p331 = por %p329, %p330
      %s333 = sadd.s32 %s332, 1
      %p336 = scmp.eq.s32.totalorder %s36, 3
      %p337 = scmp.ne.s32.totalorder %s332, %s334
      %p338 = scmp.eq.s32.totalorder %s36, 0
      %p339 = por %p337, %p338
      %p340 = scmp.ne.s32.totalorder %s332, %s334
      %p341 = scmp.eq.s32.totalorder %s41, 3
      %p342 = por %p340, %p341
      %p343 = scmp.ne.s32.totalorder %s334, %s335
      %p344 = scmp.eq.s32.totalorder %s41, 0
      %p345 = por %p343, %p344
      %p346 = scmp.ne.s32.totalorder %s334, %s335
      %p347 = scmp.eq.s32.totalorder %s42, 3
      %p348 = por %p346, %p347
      %p350 = scmp.ne.s32.totalorder %s335, %s349
      %p351 = scmp.eq.s32.totalorder %s42, 0
      %p352 = por %p350, %p351
      %s354 = sadd.s32 %s353, 1
      %p357 = scmp.eq.s32.totalorder %s36, 3
      %p358 = scmp.ne.s32.totalorder %s353, %s355
      %p359 = scmp.eq.s32.totalorder %s36, 0
      %p360 = por %p358, %p359
      %p361 = scmp.ne.s32.totalorder %s353, %s355
      %p362 = scmp.eq.s32.totalorder %s41, 3
      %p363 = por %p361, %p362
      %p364 = scmp.ne.s32.totalorder %s355, %s356
      %p365 = scmp.eq.s32.totalorder %s41, 0
      %p366 = por %p364, %p365
      %p367 = scmp.ne.s32.totalorder %s355, %s356
      %p368 = scmp.eq.s32.totalorder %s42, 3
      %p369 = por %p367, %p368
      %p371 = scmp.ne.s32.totalorder %s356, %s370
      %p372 = scmp.eq.s32.totalorder %s42, 0
      %p373 = por %p371, %p372
      %s375 = sadd.s32 %s374, 1
      %p378 = scmp.eq.s32.totalorder %s36, 3
      %p379 = scmp.ne.s32.totalorder %s374, %s376
      %p380 = scmp.eq.s32.totalorder %s36, 0
      %p381 = por %p379, %p380
      %p382 = scmp.ne.s32.totalorder %s374, %s376
      %p383 = scmp.eq.s32.totalorder %s41, 3
      %p384 = por %p382, %p383
      %p385 = scmp.ne.s32.totalorder %s376, %s377
      %p386 = scmp.eq.s32.totalorder %s41, 0
      %p387 = por %p385, %p386
      %p388 = scmp.ne.s32.totalorder %s376, %s377
      %p389 = scmp.eq.s32.totalorder %s42, 3
      %p390 = por %p388, %p389
      %p392 = scmp.ne.s32.totalorder %s377, %s391
      %p393 = scmp.eq.s32.totalorder %s42, 0
      %p394 = por %p392, %p393
      %s396 = sadd.s32 %s395, 1
      %p399 = scmp.eq.s32.totalorder %s36, 3
      %p400 = scmp.ne.s32.totalorder %s395, %s397
      %p401 = scmp.eq.s32.totalorder %s36, 0
      %p402 = por %p400, %p401
      %p403 = scmp.ne.s32.totalorder %s395, %s397
      %p404 = scmp.eq.s32.totalorder %s41, 3
      %p405 = por %p403, %p404
      %p406 = scmp.ne.s32.totalorder %s397, %s398
      %p407 = scmp.eq.s32.totalorder %s41, 0
      %p408 = por %p406, %p407
      %p409 = scmp.ne.s32.totalorder %s397, %s398
      %p410 = scmp.eq.s32.totalorder %s42, 3
      %p411 = por %p409, %p410
      %p413 = scmp.ne.s32.totalorder %s398, %s412
      %p414 = scmp.eq.s32.totalorder %s42, 0
      %p415 = por %p413, %p414
      %s416 = ssub.s32 %s36, %s43
      %p417 = scmp.eq.s32.totalorder %s416, 0
      %s419 = sadd.s32 %s418, 1
      %s420 = scalar_select %p417, %s418, %s419
      %p423 = pneg %p417
      %p424 = scmp.eq.s32.totalorder %s36, 3
      %p425 = por %p423, %p424
      %p426 = scmp.ne.s32.totalorder %s418, %s421
      %p427 = scmp.eq.s32.totalorder %s36, 0
      %p428 = por %p426, %p427
      %p429 = scmp.ne.s32.totalorder %s418, %s421
      %p430 = scmp.eq.s32.totalorder %s41, 3
      %p431 = por %p429, %p430
      %p432 = scmp.ne.s32.totalorder %s421, %s422
      %p433 = scmp.eq.s32.totalorder %s41, 0
      %p434 = por %p432, %p433
      %p435 = scmp.ne.s32.totalorder %s421, %s422
      %p436 = scmp.eq.s32.totalorder %s42, 3
      %p437 = por %p435, %p436
      %p439 = scmp.ne.s32.totalorder %s422, %s438
      %p440 = scmp.eq.s32.totalorder %s42, 0
      %p441 = por %p439, %p440
      %s442 = ssub.s32 %s36, %s43
      %p443 = scmp.eq.s32.totalorder %s442, 0
      %s445 = sadd.s32 %s444, 1
      %s446 = scalar_select %p443, %s444, %s445
      %p449 = pneg %p443
      %p450 = scmp.eq.s32.totalorder %s36, 3
      %p451 = por %p449, %p450
      %p452 = scmp.ne.s32.totalorder %s444, %s447
      %p453 = scmp.eq.s32.totalorder %s36, 0
      %p454 = por %p452, %p453
      %p455 = scmp.ne.s32.totalorder %s444, %s447
      %p456 = scmp.eq.s32.totalorder %s41, 3
      %p457 = por %p455, %p456
      %p458 = scmp.ne.s32.totalorder %s447, %s448
      %p459 = scmp.eq.s32.totalorder %s41, 0
      %p460 = por %p458, %p459
      %p461 = scmp.ne.s32.totalorder %s447, %s448
      %p462 = scmp.eq.s32.totalorder %s42, 3
      %p463 = por %p461, %p462
      %p465 = scmp.ne.s32.totalorder %s448, %s464
      %p466 = scmp.eq.s32.totalorder %s42, 0
      %p467 = por %p465, %p466
      %p468 = scmp.le.s32.totalorder 1, %s36
      %p469 = scmp.lt.s32.totalorder %s36, 5
      %p470 = pnand %p468, %p469
      %p471 = pneg %p470
      // Predicated region
      $region9: #{tpu_custom_call.1} parent=5 // pred_check
        _
      $region10: #{tpu_custom_call.1} parent=5 // pred_check_branch
        %473 = sbr.rel (%p470) target = $region12
      $region11: #{tpu_custom_call.1} parent=5 // pred_region
        %s474 = ssub.s32 %s36, 1
        // Predicated region
        $region13: #{tpu_custom_call.1} parent=11 // pred_check
          %p475 = pneg %p135
        $region14: #{tpu_custom_call.1} parent=11 // pred_check_branch
          %477 = sbr.rel (%p475) target = $region16
        $region15: #{tpu_custom_call.1} parent=11 // pred_region
          _
        $region16: #{tpu_custom_call.1} parent=11 // pred_fallthru
          _
        // Predicated region
        $region17: #{tpu_custom_call.1} parent=11 // pred_check
          %p478 = pneg %p156
        $region18: #{tpu_custom_call.1} parent=11 // pred_check_branch
          %480 = sbr.rel (%p478) target = $region20
        $region19: #{tpu_custom_call.1} parent=11 // pred_region
          _
        $region20: #{tpu_custom_call.1} parent=11 // pred_fallthru
          _
        // Predicated region
        $region21: #{tpu_custom_call.1} parent=11 // pred_check
          %p481 = pneg %p177
        $region22: #{tpu_custom_call.1} parent=11 // pred_check_branch
          %483 = sbr.rel (%p481) target = $region24
        $region23: #{tpu_custom_call.1} parent=11 // pred_region
          %s485 = ssub.s32 8192, 8192
          %486 = vsyncadd [#allocation7], %s485
          %s487 = sshll.u32 [#allocation6], 4
          %s488 = int_to_ptr.vmem [resolvable:$true] %s487
          %493 = dma.hbm_to_vmem [thread:$0]  %s5, 8192, %s488, [#allocation7], 256, 256, 16
        $region24: #{tpu_custom_call.1} parent=11 // pred_fallthru
          _
        // Predicated region
        $region25: #{tpu_custom_call.1} parent=11 // pred_check
          %p494 = pneg %p198
        $region26: #{tpu_custom_call.1} parent=11 // pred_check_branch
          %496 = sbr.rel (%p494) target = $region28
        $region27: #{tpu_custom_call.1} parent=11 // pred_region
          _
        $region28: #{tpu_custom_call.1} parent=11 // pred_fallthru
          _
        // Predicated region
        $region29: #{tpu_custom_call.1} parent=11 // pred_check
          %p497 = pneg %p219
        $region30: #{tpu_custom_call.1} parent=11 // pred_check_branch
          %499 = sbr.rel (%p497) target = $region32
        $region31: #{tpu_custom_call.1} parent=11 // pred_region
          %s501 = ssub.s32 4096, 4096
          %502 = vsyncadd [#allocation7], %s501
          %s503 = sshll.u32 [#allocation8], 4
          %s504 = int_to_ptr.vmem [resolvable:$true] %s503
          %509 = dma.hbm_to_vmem [thread:$0]  %s7, 4096, %s504, [#allocation7], 128, 128, 8
        $region32: #{tpu_custom_call.1} parent=11 // pred_fallthru
          _
        // Predicated region
        $region33: #{tpu_custom_call.1} parent=11 // pred_check
          %p510 = pneg %p240
        $region34: #{tpu_custom_call.1} parent=11 // pred_check_branch
          %512 = sbr.rel (%p510) target = $region36
        $region35: #{tpu_custom_call.1} parent=11 // pred_region
          _
        $region36: #{tpu_custom_call.1} parent=11 // pred_fallthru
          _
        // Predicated region
        $region37: #{tpu_custom_call.1} parent=11 // pred_check
          %p513 = pneg %p261
        $region38: #{tpu_custom_call.1} parent=11 // pred_check_branch
          %515 = sbr.rel (%p513) target = $region40
        $region39: #{tpu_custom_call.1} parent=11 // pred_region
          %s517 = ssub.s32 8192, 8192
          %518 = vsyncadd [#allocation10], %s517
          %s519 = sshll.u32 [#allocation9], 4
          %s520 = int_to_ptr.vmem [resolvable:$true] %s519
          %525 = dma.hbm_to_vmem [thread:$0]  %s9, 8192, %s520, [#allocation10], 256, 256, 16
        $region40: #{tpu_custom_call.1} parent=11 // pred_fallthru
          _
        // Predicated region
        $region41: #{tpu_custom_call.1} parent=11 // pred_check
          %p526 = pneg %p282
        $region42: #{tpu_custom_call.1} parent=11 // pred_check_branch
          %528 = sbr.rel (%p526) target = $region44
        $region43: #{tpu_custom_call.1} parent=11 // pred_region
          _
        $region44: #{tpu_custom_call.1} parent=11 // pred_fallthru
          _
        // Predicated region
        $region45: #{tpu_custom_call.1} parent=11 // pred_check
          %p529 = pneg %p303
        $region46: #{tpu_custom_call.1} parent=11 // pred_check_branch
          %531 = sbr.rel (%p529) target = $region48
        $region47: #{tpu_custom_call.1} parent=11 // pred_region
          %s533 = ssub.s32 4096, 4096
          %534 = vsyncadd [#allocation10], %s533
          %s535 = sshll.u32 [#allocation11], 4
          %s536 = int_to_ptr.vmem [resolvable:$true] %s535
          %541 = dma.hbm_to_vmem [thread:$0]  %s11, 4096, %s536, [#allocation10], 128, 128, 8
        $region48: #{tpu_custom_call.1} parent=11 // pred_fallthru
          _
        // Predicated region
        $region49: #{tpu_custom_call.1} parent=11 // pred_check
          %p542 = pneg %p324
        $region50: #{tpu_custom_call.1} parent=11 // pred_check_branch
          %544 = sbr.rel (%p542) target = $region52
        $region51: #{tpu_custom_call.1} parent=11 // pred_region
          _
        $region52: #{tpu_custom_call.1} parent=11 // pred_fallthru
          _
        // Predicated region
        $region53: #{tpu_custom_call.1} parent=11 // pred_check
          %p545 = pneg %p345
        $region54: #{tpu_custom_call.1} parent=11 // pred_check_branch
          %547 = sbr.rel (%p545) target = $region56
        $region55: #{tpu_custom_call.1} parent=11 // pred_region
          _
        $region56: #{tpu_custom_call.1} parent=11 // pred_fallthru
          _
        // Predicated region
        $region57: #{tpu_custom_call.1} parent=11 // pred_check
          %p548 = pneg %p366
        $region58: #{tpu_custom_call.1} parent=11 // pred_check_branch
          %550 = sbr.rel (%p548) target = $region60
        $region59: #{tpu_custom_call.1} parent=11 // pred_region
          _
        $region60: #{tpu_custom_call.1} parent=11 // pred_fallthru
          _
        // Predicated region
        $region61: #{tpu_custom_call.1} parent=11 // pred_check
          %p551 = pneg %p387
        $region62: #{tpu_custom_call.1} parent=11 // pred_check_branch
          %553 = sbr.rel (%p551) target = $region64
        $region63: #{tpu_custom_call.1} parent=11 // pred_region
          %s555 = ssub.s32 8192, 8192
          %556 = vsyncadd [#allocation13], %s555
          %s557 = sshll.u32 [#allocation12], 4
          %s558 = int_to_ptr.vmem [resolvable:$true] %s557
          %563 = dma.hbm_to_vmem [thread:$0]  %s15, 8192, %s558, [#allocation13], 256, 256, 16
        $region64: #{tpu_custom_call.1} parent=11 // pred_fallthru
          _
        // Predicated region
        $region65: #{tpu_custom_call.1} parent=11 // pred_check
          %p564 = pneg %p408
        $region66: #{tpu_custom_call.1} parent=11 // pred_check_branch
          %566 = sbr.rel (%p564) target = $region68
        $region67: #{tpu_custom_call.1} parent=11 // pred_region
          _
        $region68: #{tpu_custom_call.1} parent=11 // pred_fallthru
          _
      $region12: #{tpu_custom_call.1} parent=5 // pred_fallthru
        _
      %p567 = scmp.lt.s32.totalorder %s36, 4
      // Predicated region
      $region69: #{tpu_custom_call.1} parent=5 // pred_check
        %p568 = pneg %p567
      $region70: #{tpu_custom_call.1} parent=5 // pred_check_branch
        %570 = sbr.rel (%p568) target = $region72
      $region71: #{tpu_custom_call.1} parent=5 // pred_region
        // Predicated region
        $region73: #{tpu_custom_call.1} parent=71 // pred_check
          %p571 = pneg %p56
        $region74: #{tpu_custom_call.1} parent=71 // pred_check_branch
          %573 = sbr.rel (%p571) target = $region76
        $region75: #{tpu_custom_call.1} parent=71 // pred_region
          %s574 = sand.u32 %s46, 1
          %s575 = scalar_lea.sflag [#allocation4], %s574
          %s576 = sand.u32 %s46, 1
          %s577 = smul.addr %s576, 128
          %s578 = scalar_lea.vmem [#allocation3], %s577
          %s580 = ssub.s32 2048, 2048
          %581 = vsyncadd %s575, %s580
          %s582 = smul.addr %s36, 16
          %s583 = smul.addr %s582, 128
          %s584 = scalar_lea.hbm %s0, %s583
          %s585 = sshll.u32 %s578, 4
          %s586 = int_to_ptr.vmem [resolvable:$true] %s585
          %591 = dma.hbm_to_vmem [thread:$0]  %s584, 2048, %s586, %s575, 256, 256, 16
        $region76: #{tpu_custom_call.1} parent=71 // pred_fallthru
          _
        // Predicated region
        $region77: #{tpu_custom_call.1} parent=71 // pred_check
          %p592 = pneg %p82
        $region78: #{tpu_custom_call.1} parent=71 // pred_check_branch
          %594 = sbr.rel (%p592) target = $region80
        $region79: #{tpu_custom_call.1} parent=71 // pred_region
          %p595 = scmp.lt.s32.totalorder %s36, 3
          %s596 = scalar_select %p595, %s36, 3
          %s597 = smul.addr %s596, 2
          %s598 = scalar_lea.vmem %s1, %s597
        $region80: #{tpu_custom_call.1} parent=71 // pred_fallthru
          _
        // Predicated region
        $region81: #{tpu_custom_call.1} parent=71 // pred_check
          %p599 = pneg %p108
        $region82: #{tpu_custom_call.1} parent=71 // pred_check_branch
          %601 = sbr.rel (%p599) target = $region84
        $region83: #{tpu_custom_call.1} parent=71 // pred_region
          %p602 = scmp.lt.s32.totalorder %s36, 3
          %s603 = scalar_select %p602, %s36, 3
          %s604 = smul.addr %s603, 2
          %s605 = scalar_lea.vmem %s2, %s604
        $region84: #{tpu_custom_call.1} parent=71 // pred_fallthru
          _
      $region72: #{tpu_custom_call.1} parent=5 // pred_fallthru
        _
      %p606 = scmp.le.s32.totalorder 1, %s36
      %p607 = scmp.lt.s32.totalorder %s36, 5
      %p608 = pnand %p606, %p607
      %p609 = pneg %p608
      // Predicated region
      $region85: #{tpu_custom_call.1} parent=5 // pred_check
        _
      $region86: #{tpu_custom_call.1} parent=5 // pred_check_branch
        %611 = sbr.rel (%p608) target = $region88
      $region87: #{tpu_custom_call.1} parent=5 // pred_region
        %s612 = ssub.s32 %s36, 1
        %s613 = sand.u32 %s49, 1
        %s614 = scalar_lea.sflag [#allocation4], %s613
        %s615 = sand.u32 %s49, 1
        %s616 = smul.addr %s615, 128
        %s617 = scalar_lea.vmem [#allocation3], %s616
        // Predicated region
        $region89: #{tpu_custom_call.1} parent=87 // pred_check
          %p618 = pneg %p62
        $region90: #{tpu_custom_call.1} parent=87 // pred_check_branch
          %620 = sbr.rel (%p618) target = $region92
        $region91: #{tpu_custom_call.1} parent=87 // pred_region
          %621 = dma.done %s614, 2048
        $region92: #{tpu_custom_call.1} parent=87 // pred_fallthru
          _
        // Predicated region
        $region93: #{tpu_custom_call.1} parent=87 // pred_check
          %p622 = pneg %p177
        $region94: #{tpu_custom_call.1} parent=87 // pred_check_branch
          %624 = sbr.rel (%p622) target = $region96
        $region95: #{tpu_custom_call.1} parent=87 // pred_region
          %625 = dma.done [#allocation7], 8192
        $region96: #{tpu_custom_call.1} parent=87 // pred_fallthru
          _
        // Predicated region
        $region97: #{tpu_custom_call.1} parent=87 // pred_check
          %p626 = pneg %p219
        $region98: #{tpu_custom_call.1} parent=87 // pred_check_branch
          %628 = sbr.rel (%p626) target = $region100
        $region99: #{tpu_custom_call.1} parent=87 // pred_region
          %629 = dma.done [#allocation7], 4096
        $region100: #{tpu_custom_call.1} parent=87 // pred_fallthru
          _
        // Predicated region
        $region101: #{tpu_custom_call.1} parent=87 // pred_check
          %p630 = pneg %p261
        $region102: #{tpu_custom_call.1} parent=87 // pred_check_branch
          %632 = sbr.rel (%p630) target = $region104
        $region103: #{tpu_custom_call.1} parent=87 // pred_region
          %633 = dma.done [#allocation10], 8192
        $region104: #{tpu_custom_call.1} parent=87 // pred_fallthru
          _
        // Predicated region
        $region105: #{tpu_custom_call.1} parent=87 // pred_check
          %p634 = pneg %p303
        $region106: #{tpu_custom_call.1} parent=87 // pred_check_branch
          %636 = sbr.rel (%p634) target = $region108
        $region107: #{tpu_custom_call.1} parent=87 // pred_region
          %637 = dma.done [#allocation10], 4096
        $region108: #{tpu_custom_call.1} parent=87 // pred_fallthru
          _
        // Predicated region
        $region109: #{tpu_custom_call.1} parent=87 // pred_check
          %p638 = pneg %p387
        $region110: #{tpu_custom_call.1} parent=87 // pred_check_branch
          %640 = sbr.rel (%p638) target = $region112
        $region111: #{tpu_custom_call.1} parent=87 // pred_region
          %641 = dma.done [#allocation13], 8192
        $region112: #{tpu_custom_call.1} parent=87 // pred_fallthru
          _
        %s642 = sand.u32 %s49, 1
        %s643 = scalar_lea.sflag [#allocation4], %s642
        %s644 = sand.u32 %s49, 1
        %s645 = smul.addr %s644, 128
        %s646 = scalar_lea.vmem [#allocation3], %s645
        %p647 = pneg %p62
        %p648 = pneg %p59
        %p649 = scmp.lt.s32.totalorder %s41, 3
        %s650 = scalar_select %p649, %s41, 3
        %s651 = smul.addr %s650, 2
        %s652 = scalar_lea.vmem %s1, %s651
        %p653 = pneg %p88
        %p654 = pneg %p85
        %p655 = scmp.lt.s32.totalorder %s41, 3
        %s656 = scalar_select %p655, %s41, 3
        %s657 = smul.addr %s656, 2
        %s658 = scalar_lea.vmem %s2, %s657
        %p659 = pneg %p114
        %p660 = pneg %p111
        %p661 = pneg %p135
        %p662 = pneg %p132
        %p663 = pneg %p156
        %p664 = pneg %p153
        %p665 = pneg %p177
        %p666 = pneg %p174
        %p667 = pneg %p198
        %p668 = pneg %p195
        %p669 = pneg %p219
        %p670 = pneg %p216
        %p671 = pneg %p240
        %p672 = pneg %p237
        %p673 = pneg %p261
        %p674 = pneg %p258
        %p675 = pneg %p282
        %p676 = pneg %p279
        %p677 = pneg %p303
        %p678 = pneg %p300
        %p679 = pneg %p324
        %p680 = pneg %p321
        %p681 = pneg %p345
        %p682 = pneg %p342
        %p683 = pneg %p366
        %p684 = pneg %p363
        %p685 = pneg %p387
        %p686 = pneg %p384
        %p687 = pneg %p408
        %p688 = pneg %p405
        %p689 = pneg %p434
        %p690 = pneg %p431
        %s691 = sand.u32 %s421, 1
        %s692 = scalar_lea.sflag [#allocation5], %s691
        %s693 = sand.u32 %s421, 1
        %s694 = smul.addr %s693, 2
        %s695 = scalar_lea.vmem [#allocation14], %s694
        %p696 = pneg %p460
        %p697 = pneg %p457
        %p698 = scmp.lt.s32.totalorder %s41, 3
        %s699 = scalar_select %p698, %s41, 3
        %s700 = smul.addr %s699, 9
        %s701 = smul.addr %s700, 8
        %s702 = scalar_lea.vmem %s18, %s701
        %p703 = scmp.lt.s32.totalorder %s41, 3
        %s704 = scalar_select %p703, %s41, 3
        %s705 = smul.addr %s704, 2
        %s706 = scalar_lea.vmem %s1, %s705
        %p707 = scmp.lt.s32.totalorder %s41, 3
        %s708 = scalar_select %p707, %s41, 3
        %s709 = smul.addr %s708, 2
        %s710 = scalar_lea.vmem %s2, %s709
        %p711 = scmp.lt.s32.totalorder %s41, 3
        %s712 = scalar_select %p711, %s41, 3
        %s713 = smul.addr %s712, 9
        %s714 = smul.addr %s713, 8
        %s715 = scalar_lea.vmem %s18, %s714
        %v717 = vld [vmem:[%s617] sm:$0xff]
        %v718 = vld [vmem:[%s617 + $0x8] sm:$0xff]
        %v719 = vld [vmem:[%s617 + $0x10] sm:$0xff]
        %v720 = vld [vmem:[%s617 + $0x18] sm:$0xff]
        %v721 = vld [vmem:[%s617 + $0x20] sm:$0xff]
        %v722 = vld [vmem:[%s617 + $0x28] sm:$0xff]
        %v723 = vld [vmem:[%s617 + $0x30] sm:$0xff]
        %v724 = vld [vmem:[%s617 + $0x38] sm:$0xff]
        %v725 = vld [vmem:[%s617 + $0x40] sm:$0xff]
        %v726 = vld [vmem:[%s617 + $0x48] sm:$0xff]
        %v727 = vld [vmem:[%s617 + $0x50] sm:$0xff]
        %v728 = vld [vmem:[%s617 + $0x58] sm:$0xff]
        %v729 = vld [vmem:[%s617 + $0x60] sm:$0xff]
        %v730 = vld [vmem:[%s617 + $0x68] sm:$0xff]
        %v731 = vld [vmem:[%s617 + $0x70] sm:$0xff]
        %v732 = vld [vmem:[%s617 + $0x78] sm:$0xff]
        %v733 = vld [vmem:[%s706] sm:$0x3]
        %v734 = vld [vmem:[%s710] sm:$0x3]
        %v735 = vpack.c.bf16 %v719, %v717
        %v736 = vpack.c.bf16 %v720, %v718
        %v737 = vpack.c.bf16 %v723, %v721
        %v738 = vpack.c.bf16 %v724, %v722
        %v739 = vpack.c.bf16 %v727, %v725
        %v740 = vpack.c.bf16 %v728, %v726
        %v741 = vpack.c.bf16 %v731, %v729
        %v742 = vpack.c.bf16 %v732, %v730
        %v743 = vld [vmem:[%s3] sm:$0xf]
        %v744 = vld [vmem:[%s3 + $0x4] sm:$0xf]
        %v745 = vld [vmem:[%s3 + $0x8] sm:$0xf]
        %v746 = vld [vmem:[%s3 + $0xc] sm:$0xf]
        %v747 = vld [vmem:[%s3 + $0x10] sm:$0xf]
        %v748 = vld [vmem:[%s3 + $0x14] sm:$0xf]
        %v749 = vld [vmem:[%s3 + $0x18] sm:$0xf]
        %v750 = vld [vmem:[%s3 + $0x1c] sm:$0xf]
        %v751 = vld [vmem:[%s3 + $0x20] sm:$0xf]
        %v752 = vld [vmem:[%s3 + $0x24] sm:$0xf]
        %v753 = vld [vmem:[%s3 + $0x28] sm:$0xf]
        %v754 = vld [vmem:[%s3 + $0x2c] sm:$0xf]
        %v755 = vld [vmem:[%s3 + $0x30] sm:$0xf]
        %v756 = vld [vmem:[%s3 + $0x34] sm:$0xf]
        %v757 = vld [vmem:[%s3 + $0x38] sm:$0xf]
        %v758 = vld [vmem:[%s3 + $0x3c] sm:$0xf]
        %v759 = vld [vmem:[%s3 + $0x40] sm:$0xf]
        %v760 = vld [vmem:[%s3 + $0x44] sm:$0xf]
        %v761 = vld [vmem:[%s3 + $0x48] sm:$0xf]
        %v762 = vld [vmem:[%s3 + $0x4c] sm:$0xf]
        %v763 = vld [vmem:[%s3 + $0x50] sm:$0xf]
        %v764 = vld [vmem:[%s3 + $0x54] sm:$0xf]
        %v765 = vld [vmem:[%s3 + $0x58] sm:$0xf]
        %v766 = vld [vmem:[%s3 + $0x5c] sm:$0xf]
        %v767 = vld [vmem:[%s3 + $0x60] sm:$0xf]
        %v768 = vld [vmem:[%s3 + $0x64] sm:$0xf]
        %v769 = vld [vmem:[%s3 + $0x68] sm:$0xf]
        %v770 = vld [vmem:[%s3 + $0x6c] sm:$0xf]
        %v771 = vld [vmem:[%s3 + $0x70] sm:$0xf]
        %v772 = vld [vmem:[%s3 + $0x74] sm:$0xf]
        %v773 = vld [vmem:[%s3 + $0x78] sm:$0xf]
        %v774 = vld [vmem:[%s3 + $0x7c] sm:$0xf]
        %v775 = vld [vmem:[%s4] sm:$0x1]
        %v777 = vlaneseq
        %v778 = vshrl.u32 %v777, 7
        %v779 = vsub.s32 0, %v778
        %v780 = vrot.slane %v775, %v779
        %v814 = vunpack.c.l.b16 %v743
        %v815 = vunpack.c.l.b16 %v744
        %v816 = vunpack.c.l.b16 %v745
        %v817 = vunpack.c.l.b16 %v746
        %v818 = vunpack.c.l.b16 %v747
        %v819 = vunpack.c.l.b16 %v748
        %v820 = vunpack.c.l.b16 %v749
        %v821 = vunpack.c.l.b16 %v750
        %v822 = vunpack.c.l.b16 %v751
        %v823 = vunpack.c.l.b16 %v752
        %v824 = vunpack.c.l.b16 %v753
        %v825 = vunpack.c.l.b16 %v754
        %v826 = vunpack.c.l.b16 %v755
        %v827 = vunpack.c.l.b16 %v756
        %v828 = vunpack.c.l.b16 %v757
        %v829 = vunpack.c.l.b16 %v758
        %v830 = vunpack.c.l.b16 %v759
        %v831 = vunpack.c.l.b16 %v760
        %v832 = vunpack.c.l.b16 %v761
        %v833 = vunpack.c.l.b16 %v762
        %v834 = vunpack.c.l.b16 %v763
        %v835 = vunpack.c.l.b16 %v764
        %v836 = vunpack.c.l.b16 %v765
        %v837 = vunpack.c.l.b16 %v766
        %v838 = vunpack.c.l.b16 %v767
        %v839 = vunpack.c.l.b16 %v768
        %v840 = vunpack.c.l.b16 %v769
        %v841 = vunpack.c.l.b16 %v770
        %v842 = vunpack.c.l.b16 %v771
        %v843 = vunpack.c.l.b16 %v772
        %v844 = vunpack.c.l.b16 %v773
        %v845 = vunpack.c.l.b16 %v774
        %v846 = vpack.c.b16 %v815, %v814
        %v847 = vpack.c.b16 %v817, %v816
        %v848 = vpack.c.b16 %v819, %v818
        %v849 = vpack.c.b16 %v821, %v820
        %v850 = vpack.c.b16 %v823, %v822
        %v851 = vpack.c.b16 %v825, %v824
        %v852 = vpack.c.b16 %v827, %v826
        %v853 = vpack.c.b16 %v829, %v828
        %v854 = vpack.c.b16 %v831, %v830
        %v855 = vpack.c.b16 %v833, %v832
        %v856 = vpack.c.b16 %v835, %v834
        %v857 = vpack.c.b16 %v837, %v836
        %v858 = vpack.c.b16 %v839, %v838
        %v859 = vpack.c.b16 %v841, %v840
        %v860 = vpack.c.b16 %v843, %v842
        %v861 = vpack.c.b16 %v845, %v844
        %878 = vmatprep.subr.bf16.mxu0 0
        %879 = vmatpush1.bf16.msra.mxu0 %v846
        %880 = vmatprep.subr.bf16.mxu0 0
        %881 = vmatpush1.bf16.msra.mxu0 %v847
        %882 = vmatprep.subr.bf16.mxu0 0
        %883 = vmatpush1.bf16.msra.mxu0 %v848
        %884 = vmatprep.subr.bf16.mxu0 0
        %885 = vmatpush1.bf16.msra.mxu0 %v849
        %886 = vmatprep.subr.bf16.mxu0 0
        %887 = vmatpush1.bf16.msra.mxu0 %v850
        %888 = vmatprep.subr.bf16.mxu0 0
        %889 = vmatpush1.bf16.msra.mxu0 %v851
        %890 = vmatprep.subr.bf16.mxu0 0
        %891 = vmatpush1.bf16.msra.mxu0 %v852
        %892 = vmatprep.subr.bf16.mxu0 0
        %893 = vmatpush1.bf16.msra.mxu0 %v853
        %894 = vmatprep.subr.bf16.mxu0 0
        %895 = vmatpush1.bf16.msra.mxu0 %v854
        %896 = vmatprep.subr.bf16.mxu0 0
        %897 = vmatpush1.bf16.msra.mxu0 %v855
        %898 = vmatprep.subr.bf16.mxu0 0
        %899 = vmatpush1.bf16.msra.mxu0 %v856
        %900 = vmatprep.subr.bf16.mxu0 0
        %901 = vmatpush1.bf16.msra.mxu0 %v857
        %902 = vmatprep.subr.bf16.mxu0 0
        %903 = vmatpush1.bf16.msra.mxu0 %v858
        %904 = vmatprep.subr.bf16.mxu0 0
        %905 = vmatpush1.bf16.msra.mxu0 %v859
        %906 = vmatprep.subr.bf16.mxu0 0
        %907 = vmatpush1.bf16.msra.mxu0 %v860
        %908 = vmatprep.subr.bf16.mxu0 0
        %909 = vmatpush1.bf16.msra.mxu0 %v861
        %910 = vmatprep.mubr.bf16.mxu0 %v736
        %911 = vmatmul.mubr.bf16.gmra.mrb[0].mxu0 %v735
        %v912 = vpop.f32.mrb[0].mxu0
        %v913 = vadd.f32 %v780, %v912
        %v914 = vpop.f32.mrb[0].mxu0
        %v915 = vpop.f32.mrb[0].mxu0
        %v916 = vadd.f32 %v780, %v915
        %v917 = vpop.f32.mrb[0].mxu0
        %918 = vmatprep.mubr.bf16.mxu0 %v738
        %919 = vmatmul.mubr.bf16.gmra.mrb[0].mxu0 %v737
        %v920 = vpop.f32.mrb[0].mxu0
        %v921 = vadd.f32 %v780, %v920
        %v922 = vpop.f32.mrb[0].mxu0
        %v923 = vpop.f32.mrb[0].mxu0
        %v924 = vadd.f32 %v780, %v923
        %v925 = vpop.f32.mrb[0].mxu0
        %926 = vmatprep.mubr.bf16.mxu0 %v740
        %927 = vmatmul.mubr.bf16.gmra.mrb[0].mxu0 %v739
        %v928 = vpop.f32.mrb[0].mxu0
        %v929 = vadd.f32 %v780, %v928
        %v930 = vpop.f32.mrb[0].mxu0
        %v931 = vpop.f32.mrb[0].mxu0
        %v932 = vadd.f32 %v780, %v931
        %v933 = vpop.f32.mrb[0].mxu0
        %934 = vmatprep.mubr.bf16.mxu0 %v742
        %935 = vmatmul.mubr.bf16.gmra.mrb[0].mxu0 %v741
        %v936 = vpop.f32.mrb[0].mxu0
        %v937 = vadd.f32 %v780, %v936
        %v938 = vpop.f32.mrb[0].mxu0
        %v939 = vpop.f32.mrb[0].mxu0
        %v940 = vadd.f32 %v780, %v939
        %v941 = vpop.f32.mrb[0].mxu0
        %942 = vdwg.mxu0
        %v943 = vld [vmem:[#allocation6] sm:$0xff]
        %v944 = vld [vmem:[#allocation6 + $0x8] sm:$0xff]
        %v945 = vld [vmem:[#allocation6 + $0x10] sm:$0xff]
        %v946 = vld [vmem:[#allocation6 + $0x18] sm:$0xff]
        %v947 = vld [vmem:[#allocation6 + $0x20] sm:$0xff]
        %v948 = vld [vmem:[#allocation6 + $0x28] sm:$0xff]
        %v949 = vld [vmem:[#allocation6 + $0x30] sm:$0xff]
        %v950 = vld [vmem:[#allocation6 + $0x38] sm:$0xff]
        %v951 = vld [vmem:[#allocation6 + $0x40] sm:$0xff]
        %v952 = vld [vmem:[#allocation6 + $0x48] sm:$0xff]
        %v953 = vld [vmem:[#allocation6 + $0x50] sm:$0xff]
        %v954 = vld [vmem:[#allocation6 + $0x58] sm:$0xff]
        %v955 = vld [vmem:[#allocation6 + $0x60] sm:$0xff]
        %v956 = vld [vmem:[#allocation6 + $0x68] sm:$0xff]
        %v957 = vld [vmem:[#allocation6 + $0x70] sm:$0xff]
        %v958 = vld [vmem:[#allocation6 + $0x78] sm:$0xff]
        %v959 = vld [vmem:[#allocation6 + $0x80] sm:$0xff]
        %v960 = vld [vmem:[#allocation6 + $0x88] sm:$0xff]
        %v961 = vld [vmem:[#allocation6 + $0x90] sm:$0xff]
        %v962 = vld [vmem:[#allocation6 + $0x98] sm:$0xff]
        %v963 = vld [vmem:[#allocation6 + $0xa0] sm:$0xff]
        %v964 = vld [vmem:[#allocation6 + $0xa8] sm:$0xff]
        %v965 = vld [vmem:[#allocation6 + $0xb0] sm:$0xff]
        %v966 = vld [vmem:[#allocation6 + $0xb8] sm:$0xff]
        %v967 = vld [vmem:[#allocation6 + $0xc0] sm:$0xff]
        %v968 = vld [vmem:[#allocation6 + $0xc8] sm:$0xff]
        %v969 = vld [vmem:[#allocation6 + $0xd0] sm:$0xff]
        %v970 = vld [vmem:[#allocation6 + $0xd8] sm:$0xff]
        %v971 = vld [vmem:[#allocation6 + $0xe0] sm:$0xff]
        %v972 = vld [vmem:[#allocation6 + $0xe8] sm:$0xff]
        %v973 = vld [vmem:[#allocation6 + $0xf0] sm:$0xff]
        %v974 = vld [vmem:[#allocation6 + $0xf8] sm:$0xff]
        %v975 = vld [vmem:[#allocation6 + $0x100] sm:$0xff]
        %v976 = vld [vmem:[#allocation6 + $0x108] sm:$0xff]
        %v977 = vld [vmem:[#allocation6 + $0x110] sm:$0xff]
        %v978 = vld [vmem:[#allocation6 + $0x118] sm:$0xff]
        %v979 = vld [vmem:[#allocation6 + $0x120] sm:$0xff]
        %v980 = vld [vmem:[#allocation6 + $0x128] sm:$0xff]
        %v981 = vld [vmem:[#allocation6 + $0x130] sm:$0xff]
        %v982 = vld [vmem:[#allocation6 + $0x138] sm:$0xff]
        %v983 = vld [vmem:[#allocation6 + $0x140] sm:$0xff]
        %v984 = vld [vmem:[#allocation6 + $0x148] sm:$0xff]
        %v985 = vld [vmem:[#allocation6 + $0x150] sm:$0xff]
        %v986 = vld [vmem:[#allocation6 + $0x158] sm:$0xff]
        %v987 = vld [vmem:[#allocation6 + $0x160] sm:$0xff]
        %v988 = vld [vmem:[#allocation6 + $0x168] sm:$0xff]
        %v989 = vld [vmem:[#allocation6 + $0x170] sm:$0xff]
        %v990 = vld [vmem:[#allocation6 + $0x178] sm:$0xff]
        %v991 = vld [vmem:[#allocation6 + $0x180] sm:$0xff]
        %v992 = vld [vmem:[#allocation6 + $0x188] sm:$0xff]
        %v993 = vld [vmem:[#allocation6 + $0x190] sm:$0xff]
        %v994 = vld [vmem:[#allocation6 + $0x198] sm:$0xff]
        %v995 = vld [vmem:[#allocation6 + $0x1a0] sm:$0xff]
        %v996 = vld [vmem:[#allocation6 + $0x1a8] sm:$0xff]
        %v997 = vld [vmem:[#allocation6 + $0x1b0] sm:$0xff]
        %v998 = vld [vmem:[#allocation6 + $0x1b8] sm:$0xff]
        %v999 = vld [vmem:[#allocation6 + $0x1c0] sm:$0xff]
        %v1000 = vld [vmem:[#allocation6 + $0x1c8] sm:$0xff]
        %v1001 = vld [vmem:[#allocation6 + $0x1d0] sm:$0xff]
        %v1002 = vld [vmem:[#allocation6 + $0x1d8] sm:$0xff]
        %v1003 = vld [vmem:[#allocation6 + $0x1e0] sm:$0xff]
        %v1004 = vld [vmem:[#allocation6 + $0x1e8] sm:$0xff]
        %v1005 = vld [vmem:[#allocation6 + $0x1f0] sm:$0xff]
        %v1006 = vld [vmem:[#allocation6 + $0x1f8] sm:$0xff]
        %v1007 = vld [vmem:[%s6] sm:$0x3]
        %v1009 = vlaneseq
        %v1010 = vshrl.u32 %v1009, 7
        %v1011 = vsub.s32 0, %v1010
        %v1012 = vrot.slane %v734, %v1011
        %v1013 = vlaneseq
        %v1014 = vshrl.u32 %v1013, 7
        %v1015 = vsub.s32 1, %v1014
        %v1016 = vrot.slane %v734, %v1015
        %v1020 = vlaneseq
        %v1021 = vshrl.u32 %v1020, 7
        %v1022 = vsub.s32 0, %v1021
        %v1023 = vrot.slane %v1007, %v1022
        %v1024 = vlaneseq
        %v1025 = vshrl.u32 %v1024, 7
        %v1026 = vsub.s32 1, %v1025
        %v1027 = vrot.slane %v1007, %v1026
        %1030 = vmatprep.subr.mxu0 %v944
        %1031 = vmatpush1.msra.mxu0 %v943
        %1032 = vmatprep.subr.mxu0 %v946
        %1033 = vmatpush1.msra.mxu0 %v945
        %1034 = vmatprep.subr.mxu0 %v948
        %1035 = vmatpush1.msra.mxu0 %v947
        %1036 = vmatprep.subr.mxu0 %v950
        %1037 = vmatpush1.msra.mxu0 %v949
        %1038 = vmatprep.subr.mxu0 %v952
        %1039 = vmatpush1.msra.mxu0 %v951
        %1040 = vmatprep.subr.mxu0 %v954
        %1041 = vmatpush1.msra.mxu0 %v953
        %1042 = vmatprep.subr.mxu0 %v956
        %1043 = vmatpush1.msra.mxu0 %v955
        %1044 = vmatprep.subr.mxu0 %v958
        %1045 = vmatpush1.msra.mxu0 %v957
        %1046 = vmatprep.subr.mxu0 %v960
        %1047 = vmatpush1.msra.mxu0 %v959
        %1048 = vmatprep.subr.mxu0 %v962
        %1049 = vmatpush1.msra.mxu0 %v961
        %1050 = vmatprep.subr.mxu0 %v964
        %1051 = vmatpush1.msra.mxu0 %v963
        %1052 = vmatprep.subr.mxu0 %v966
        %1053 = vmatpush1.msra.mxu0 %v965
        %1054 = vmatprep.subr.mxu0 %v968
        %1055 = vmatpush1.msra.mxu0 %v967
        %1056 = vmatprep.subr.mxu0 %v970
        %1057 = vmatpush1.msra.mxu0 %v969
        %1058 = vmatprep.subr.mxu0 %v972
        %1059 = vmatpush1.msra.mxu0 %v971
        %1060 = vmatprep.subr.mxu0 %v974
        %1061 = vmatpush1.msra.mxu0 %v973
        %1062 = vmatprep.subr.mxu0 %v976
        %1063 = vmatpush1.msra.mxu0 %v975
        %1064 = vmatprep.subr.mxu0 %v978
        %1065 = vmatpush1.msra.mxu0 %v977
        %1066 = vmatprep.subr.mxu0 %v980
        %1067 = vmatpush1.msra.mxu0 %v979
        %1068 = vmatprep.subr.mxu0 %v982
        %1069 = vmatpush1.msra.mxu0 %v981
        %1070 = vmatprep.subr.mxu0 %v984
        %1071 = vmatpush1.msra.mxu0 %v983
        %1072 = vmatprep.subr.mxu0 %v986
        %1073 = vmatpush1.msra.mxu0 %v985
        %1074 = vmatprep.subr.mxu0 %v988
        %1075 = vmatpush1.msra.mxu0 %v987
        %1076 = vmatprep.subr.mxu0 %v990
        %1077 = vmatpush1.msra.mxu0 %v989
        %1078 = vmatprep.subr.mxu0 %v992
        %1079 = vmatpush1.msra.mxu0 %v991
        %1080 = vmatprep.subr.mxu0 %v994
        %1081 = vmatpush1.msra.mxu0 %v993
        %1082 = vmatprep.subr.mxu0 %v996
        %1083 = vmatpush1.msra.mxu0 %v995
        %1084 = vmatprep.subr.mxu0 %v998
        %1085 = vmatpush1.msra.mxu0 %v997
        %1086 = vmatprep.subr.mxu0 %v1000
        %1087 = vmatpush1.msra.mxu0 %v999
        %1088 = vmatprep.subr.mxu0 %v1002
        %1089 = vmatpush1.msra.mxu0 %v1001
        %1090 = vmatprep.subr.mxu0 %v1004
        %1091 = vmatpush1.msra.mxu0 %v1003
        %1092 = vmatprep.subr.mxu0 %v1006
        %1093 = vmatpush1.msra.mxu0 %v1005
        %1094 = vmatprep.mubr.f32.mxu0 %v1016
        %1095 = vmatmul.mubr.f32.gmra.mrb[0].mxu0 %v1012
        %v1096 = vpop.f32.mrb[0].mxu0
        %v1097 = vadd.f32 %v1023, %v1096
        %v1098 = vpop.f32.mrb[0].mxu0
        %v1099 = vadd.f32 %v1027, %v1098
        %1100 = vdwg.mxu0
        %v1101 = vmax.f32 %v1097, 0.0
        %v1102 = vmax.f32 %v1099, 0.0
        %v1103 = vld [vmem:[#allocation8] sm:$0xff]
        %v1104 = vld [vmem:[#allocation8 + $0x8] sm:$0xff]
        %v1105 = vld [vmem:[#allocation8 + $0x10] sm:$0xff]
        %v1106 = vld [vmem:[#allocation8 + $0x18] sm:$0xff]
        %v1107 = vld [vmem:[#allocation8 + $0x20] sm:$0xff]
        %v1108 = vld [vmem:[#allocation8 + $0x28] sm:$0xff]
        %v1109 = vld [vmem:[#allocation8 + $0x30] sm:$0xff]
        %v1110 = vld [vmem:[#allocation8 + $0x38] sm:$0xff]
        %v1111 = vld [vmem:[#allocation8 + $0x40] sm:$0xff]
        %v1112 = vld [vmem:[#allocation8 + $0x48] sm:$0xff]
        %v1113 = vld [vmem:[#allocation8 + $0x50] sm:$0xff]
        %v1114 = vld [vmem:[#allocation8 + $0x58] sm:$0xff]
        %v1115 = vld [vmem:[#allocation8 + $0x60] sm:$0xff]
        %v1116 = vld [vmem:[#allocation8 + $0x68] sm:$0xff]
        %v1117 = vld [vmem:[#allocation8 + $0x70] sm:$0xff]
        %v1118 = vld [vmem:[#allocation8 + $0x78] sm:$0xff]
        %v1119 = vld [vmem:[#allocation8 + $0x80] sm:$0xff]
        %v1120 = vld [vmem:[#allocation8 + $0x88] sm:$0xff]
        %v1121 = vld [vmem:[#allocation8 + $0x90] sm:$0xff]
        %v1122 = vld [vmem:[#allocation8 + $0x98] sm:$0xff]
        %v1123 = vld [vmem:[#allocation8 + $0xa0] sm:$0xff]
        %v1124 = vld [vmem:[#allocation8 + $0xa8] sm:$0xff]
        %v1125 = vld [vmem:[#allocation8 + $0xb0] sm:$0xff]
        %v1126 = vld [vmem:[#allocation8 + $0xb8] sm:$0xff]
        %v1127 = vld [vmem:[#allocation8 + $0xc0] sm:$0xff]
        %v1128 = vld [vmem:[#allocation8 + $0xc8] sm:$0xff]
        %v1129 = vld [vmem:[#allocation8 + $0xd0] sm:$0xff]
        %v1130 = vld [vmem:[#allocation8 + $0xd8] sm:$0xff]
        %v1131 = vld [vmem:[#allocation8 + $0xe0] sm:$0xff]
        %v1132 = vld [vmem:[#allocation8 + $0xe8] sm:$0xff]
        %v1133 = vld [vmem:[#allocation8 + $0xf0] sm:$0xff]
        %v1134 = vld [vmem:[#allocation8 + $0xf8] sm:$0xff]
        %v1135 = vld [vmem:[%s8] sm:$0x1]
        %1136 = vmatprep.subr.mxu0 0.0
        %1137 = vmatpush1.msra.mxu0 %v1103
        %1138 = vmatprep.subr.mxu0 0.0
        %1139 = vmatpush1.msra.mxu0 %v1104
        %1140 = vmatprep.subr.mxu0 0.0
        %1141 = vmatpush1.msra.mxu0 %v1105
        %1142 = vmatprep.subr.mxu0 0.0
        %1143 = vmatpush1.msra.mxu0 %v1106
        %1144 = vmatprep.subr.mxu0 0.0
        %1145 = vmatpush1.msra.mxu0 %v1107
        %1146 = vmatprep.subr.mxu0 0.0
        %1147 = vmatpush1.msra.mxu0 %v1108
        %1148 = vmatprep.subr.mxu0 0.0
        %1149 = vmatpush1.msra.mxu0 %v1109
        %1150 = vmatprep.subr.mxu0 0.0
        %1151 = vmatpush1.msra.mxu0 %v1110
        %1152 = vmatprep.subr.mxu0 0.0
        %1153 = vmatpush1.msra.mxu0 %v1111
        %1154 = vmatprep.subr.mxu0 0.0
        %1155 = vmatpush1.msra.mxu0 %v1112
        %1156 = vmatprep.subr.mxu0 0.0
        %1157 = vmatpush1.msra.mxu0 %v1113
        %1158 = vmatprep.subr.mxu0 0.0
        %1159 = vmatpush1.msra.mxu0 %v1114
        %1160 = vmatprep.subr.mxu0 0.0
        %1161 = vmatpush1.msra.mxu0 %v1115
        %1162 = vmatprep.subr.mxu0 0.0
        %1163 = vmatpush1.msra.mxu0 %v1116
        %1164 = vmatprep.subr.mxu0 0.0
        %1165 = vmatpush1.msra.mxu0 %v1117
        %1166 = vmatprep.subr.mxu0 0.0
        %1167 = vmatpush1.msra.mxu0 %v1118
        %1168 = vmatprep.subr.mxu0 0.0
        %1169 = vmatpush1.msra.mxu0 %v1119
        %1170 = vmatprep.subr.mxu0 0.0
        %1171 = vmatpush1.msra.mxu0 %v1120
        %1172 = vmatprep.subr.mxu0 0.0
        %1173 = vmatpush1.msra.mxu0 %v1121
        %1174 = vmatprep.subr.mxu0 0.0
        %1175 = vmatpush1.msra.mxu0 %v1122
        %1176 = vmatprep.subr.mxu0 0.0
        %1177 = vmatpush1.msra.mxu0 %v1123
        %1178 = vmatprep.subr.mxu0 0.0
        %1179 = vmatpush1.msra.mxu0 %v1124
        %1180 = vmatprep.subr.mxu0 0.0
        %1181 = vmatpush1.msra.mxu0 %v1125
        %1182 = vmatprep.subr.mxu0 0.0
        %1183 = vmatpush1.msra.mxu0 %v1126
        %1184 = vmatprep.subr.mxu0 0.0
        %1185 = vmatpush1.msra.mxu0 %v1127
        %1186 = vmatprep.subr.mxu0 0.0
        %1187 = vmatpush1.msra.mxu0 %v1128
        %1188 = vmatprep.subr.mxu0 0.0
        %1189 = vmatpush1.msra.mxu0 %v1129
        %1190 = vmatprep.subr.mxu0 0.0
        %1191 = vmatpush1.msra.mxu0 %v1130
        %1192 = vmatprep.subr.mxu0 0.0
        %1193 = vmatpush1.msra.mxu0 %v1131
        %1194 = vmatprep.subr.mxu0 0.0
        %1195 = vmatpush1.msra.mxu0 %v1132
        %1196 = vmatprep.subr.mxu0 0.0
        %1197 = vmatpush1.msra.mxu0 %v1133
        %1198 = vmatprep.subr.mxu0 0.0
        %1199 = vmatpush1.msra.mxu0 %v1134
        %1200 = vmatprep.mubr.f32.mxu0 %v1102
        %1201 = vmatmul.mubr.f32.gmra.mrb[0].mxu0 %v1101
        %v1202 = vpop.f32.mrb[0].mxu0
        %v1203 = vadd.f32 %v1135, %v1202
        %v1204 = vpop.f32.mrb[0].mxu0
        %1205 = vdwg.mxu0
        %v1206 = vld [vmem:[#allocation9] sm:$0xff]
        %v1207 = vld [vmem:[#allocation9 + $0x8] sm:$0xff]
        %v1208 = vld [vmem:[#allocation9 + $0x10] sm:$0xff]
        %v1209 = vld [vmem:[#allocation9 + $0x18] sm:$0xff]
        %v1210 = vld [vmem:[#allocation9 + $0x20] sm:$0xff]
        %v1211 = vld [vmem:[#allocation9 + $0x28] sm:$0xff]
        %v1212 = vld [vmem:[#allocation9 + $0x30] sm:$0xff]
        %v1213 = vld [vmem:[#allocation9 + $0x38] sm:$0xff]
        %v1214 = vld [vmem:[#allocation9 + $0x40] sm:$0xff]
        %v1215 = vld [vmem:[#allocation9 + $0x48] sm:$0xff]
        %v1216 = vld [vmem:[#allocation9 + $0x50] sm:$0xff]
        %v1217 = vld [vmem:[#allocation9 + $0x58] sm:$0xff]
        %v1218 = vld [vmem:[#allocation9 + $0x60] sm:$0xff]
        %v1219 = vld [vmem:[#allocation9 + $0x68] sm:$0xff]
        %v1220 = vld [vmem:[#allocation9 + $0x70] sm:$0xff]
        %v1221 = vld [vmem:[#allocation9 + $0x78] sm:$0xff]
        %v1222 = vld [vmem:[#allocation9 + $0x80] sm:$0xff]
        %v1223 = vld [vmem:[#allocation9 + $0x88] sm:$0xff]
        %v1224 = vld [vmem:[#allocation9 + $0x90] sm:$0xff]
        %v1225 = vld [vmem:[#allocation9 + $0x98] sm:$0xff]
        %v1226 = vld [vmem:[#allocation9 + $0xa0] sm:$0xff]
        %v1227 = vld [vmem:[#allocation9 + $0xa8] sm:$0xff]
        %v1228 = vld [vmem:[#allocation9 + $0xb0] sm:$0xff]
        %v1229 = vld [vmem:[#allocation9 + $0xb8] sm:$0xff]
        %v1230 = vld [vmem:[#allocation9 + $0xc0] sm:$0xff]
        %v1231 = vld [vmem:[#allocation9 + $0xc8] sm:$0xff]
        %v1232 = vld [vmem:[#allocation9 + $0xd0] sm:$0xff]
        %v1233 = vld [vmem:[#allocation9 + $0xd8] sm:$0xff]
        %v1234 = vld [vmem:[#allocation9 + $0xe0] sm:$0xff]
        %v1235 = vld [vmem:[#allocation9 + $0xe8] sm:$0xff]
        %v1236 = vld [vmem:[#allocation9 + $0xf0] sm:$0xff]
        %v1237 = vld [vmem:[#allocation9 + $0xf8] sm:$0xff]
        %v1238 = vld [vmem:[#allocation9 + $0x100] sm:$0xff]
        %v1239 = vld [vmem:[#allocation9 + $0x108] sm:$0xff]
        %v1240 = vld [vmem:[#allocation9 + $0x110] sm:$0xff]
        %v1241 = vld [vmem:[#allocation9 + $0x118] sm:$0xff]
        %v1242 = vld [vmem:[#allocation9 + $0x120] sm:$0xff]
        %v1243 = vld [vmem:[#allocation9 + $0x128] sm:$0xff]
        %v1244 = vld [vmem:[#allocation9 + $0x130] sm:$0xff]
        %v1245 = vld [vmem:[#allocation9 + $0x138] sm:$0xff]
        %v1246 = vld [vmem:[#allocation9 + $0x140] sm:$0xff]
        %v1247 = vld [vmem:[#allocation9 + $0x148] sm:$0xff]
        %v1248 = vld [vmem:[#allocation9 + $0x150] sm:$0xff]
        %v1249 = vld [vmem:[#allocation9 + $0x158] sm:$0xff]
        %v1250 = vld [vmem:[#allocation9 + $0x160] sm:$0xff]
        %v1251 = vld [vmem:[#allocation9 + $0x168] sm:$0xff]
        %v1252 = vld [vmem:[#allocation9 + $0x170] sm:$0xff]
        %v1253 = vld [vmem:[#allocation9 + $0x178] sm:$0xff]
        %v1254 = vld [vmem:[#allocation9 + $0x180] sm:$0xff]
        %v1255 = vld [vmem:[#allocation9 + $0x188] sm:$0xff]
        %v1256 = vld [vmem:[#allocation9 + $0x190] sm:$0xff]
        %v1257 = vld [vmem:[#allocation9 + $0x198] sm:$0xff]
        %v1258 = vld [vmem:[#allocation9 + $0x1a0] sm:$0xff]
        %v1259 = vld [vmem:[#allocation9 + $0x1a8] sm:$0xff]
        %v1260 = vld [vmem:[#allocation9 + $0x1b0] sm:$0xff]
        %v1261 = vld [vmem:[#allocation9 + $0x1b8] sm:$0xff]
        %v1262 = vld [vmem:[#allocation9 + $0x1c0] sm:$0xff]
        %v1263 = vld [vmem:[#allocation9 + $0x1c8] sm:$0xff]
        %v1264 = vld [vmem:[#allocation9 + $0x1d0] sm:$0xff]
        %v1265 = vld [vmem:[#allocation9 + $0x1d8] sm:$0xff]
        %v1266 = vld [vmem:[#allocation9 + $0x1e0] sm:$0xff]
        %v1267 = vld [vmem:[#allocation9 + $0x1e8] sm:$0xff]
        %v1268 = vld [vmem:[#allocation9 + $0x1f0] sm:$0xff]
        %v1269 = vld [vmem:[#allocation9 + $0x1f8] sm:$0xff]
        %v1270 = vld [vmem:[%s10] sm:$0x3]
        %v1272 = vlaneseq
        %v1273 = vshrl.u32 %v1272, 7
        %v1274 = vsub.s32 0, %v1273
        %v1275 = vrot.slane %v733, %v1274
        %v1276 = vlaneseq
        %v1277 = vshrl.u32 %v1276, 7
        %v1278 = vsub.s32 1, %v1277
        %v1279 = vrot.slane %v733, %v1278
        %v1283 = vlaneseq
        %v1284 = vshrl.u32 %v1283, 7
        %v1285 = vsub.s32 0, %v1284
        %v1286 = vrot.slane %v1270, %v1285
        %v1287 = vlaneseq
        %v1288 = vshrl.u32 %v1287, 7
        %v1289 = vsub.s32 1, %v1288
        %v1290 = vrot.slane %v1270, %v1289
        %1293 = vmatprep.subr.mxu0 %v1207
        %1294 = vmatpush1.msra.mxu0 %v1206
        %1295 = vmatprep.subr.mxu0 %v1209
        %1296 = vmatpush1.msra.mxu0 %v1208
        %1297 = vmatprep.subr.mxu0 %v1211
        %1298 = vmatpush1.msra.mxu0 %v1210
        %1299 = vmatprep.subr.mxu0 %v1213
        %1300 = vmatpush1.msra.mxu0 %v1212
        %1301 = vmatprep.subr.mxu0 %v1215
        %1302 = vmatpush1.msra.mxu0 %v1214
        %1303 = vmatprep.subr.mxu0 %v1217
        %1304 = vmatpush1.msra.mxu0 %v1216
        %1305 = vmatprep.subr.mxu0 %v1219
        %1306 = vmatpush1.msra.mxu0 %v1218
        %1307 = vmatprep.subr.mxu0 %v1221
        %1308 = vmatpush1.msra.mxu0 %v1220
        %1309 = vmatprep.subr.mxu0 %v1223
        %1310 = vmatpush1.msra.mxu0 %v1222
        %1311 = vmatprep.subr.mxu0 %v1225
        %1312 = vmatpush1.msra.mxu0 %v1224
        %1313 = vmatprep.subr.mxu0 %v1227
        %1314 = vmatpush1.msra.mxu0 %v1226
        %1315 = vmatprep.subr.mxu0 %v1229
        %1316 = vmatpush1.msra.mxu0 %v1228
        %1317 = vmatprep.subr.mxu0 %v1231
        %1318 = vmatpush1.msra.mxu0 %v1230
        %1319 = vmatprep.subr.mxu0 %v1233
        %1320 = vmatpush1.msra.mxu0 %v1232
        %1321 = vmatprep.subr.mxu0 %v1235
        %1322 = vmatpush1.msra.mxu0 %v1234
        %1323 = vmatprep.subr.mxu0 %v1237
        %1324 = vmatpush1.msra.mxu0 %v1236
        %1325 = vmatprep.subr.mxu0 %v1239
        %1326 = vmatpush1.msra.mxu0 %v1238
        %1327 = vmatprep.subr.mxu0 %v1241
        %1328 = vmatpush1.msra.mxu0 %v1240
        %1329 = vmatprep.subr.mxu0 %v1243
        %1330 = vmatpush1.msra.mxu0 %v1242
        %1331 = vmatprep.subr.mxu0 %v1245
        %1332 = vmatpush1.msra.mxu0 %v1244
        %1333 = vmatprep.subr.mxu0 %v1247
        %1334 = vmatpush1.msra.mxu0 %v1246
        %1335 = vmatprep.subr.mxu0 %v1249
        %1336 = vmatpush1.msra.mxu0 %v1248
        %1337 = vmatprep.subr.mxu0 %v1251
        %1338 = vmatpush1.msra.mxu0 %v1250
        %1339 = vmatprep.subr.mxu0 %v1253
        %1340 = vmatpush1.msra.mxu0 %v1252
        %1341 = vmatprep.subr.mxu0 %v1255
        %1342 = vmatpush1.msra.mxu0 %v1254
        %1343 = vmatprep.subr.mxu0 %v1257
        %1344 = vmatpush1.msra.mxu0 %v1256
        %1345 = vmatprep.subr.mxu0 %v1259
        %1346 = vmatpush1.msra.mxu0 %v1258
        %1347 = vmatprep.subr.mxu0 %v1261
        %1348 = vmatpush1.msra.mxu0 %v1260
        %1349 = vmatprep.subr.mxu0 %v1263
        %1350 = vmatpush1.msra.mxu0 %v1262
        %1351 = vmatprep.subr.mxu0 %v1265
        %1352 = vmatpush1.msra.mxu0 %v1264
        %1353 = vmatprep.subr.mxu0 %v1267
        %1354 = vmatpush1.msra.mxu0 %v1266
        %1355 = vmatprep.subr.mxu0 %v1269
        %1356 = vmatpush1.msra.mxu0 %v1268
        %1357 = vmatprep.mubr.f32.mxu0 %v1279
        %1358 = vmatmul.mubr.f32.gmra.mrb[0].mxu0 %v1275
        %v1359 = vpop.f32.mrb[0].mxu0
        %v1360 = vadd.f32 %v1286, %v1359
        %v1361 = vpop.f32.mrb[0].mxu0
        %v1362 = vadd.f32 %v1290, %v1361
        %1363 = vdwg.mxu0
        %v1364 = vtanh.pop %v1360
        %v1365 = vtanh.pop %v1362
        %v1366 = vld [vmem:[#allocation11] sm:$0xff]
        %v1367 = vld [vmem:[#allocation11 + $0x8] sm:$0xff]
        %v1368 = vld [vmem:[#allocation11 + $0x10] sm:$0xff]
        %v1369 = vld [vmem:[#allocation11 + $0x18] sm:$0xff]
        %v1370 = vld [vmem:[#allocation11 + $0x20] sm:$0xff]
        %v1371 = vld [vmem:[#allocation11 + $0x28] sm:$0xff]
        %v1372 = vld [vmem:[#allocation11 + $0x30] sm:$0xff]
        %v1373 = vld [vmem:[#allocation11 + $0x38] sm:$0xff]
        %v1374 = vld [vmem:[#allocation11 + $0x40] sm:$0xff]
        %v1375 = vld [vmem:[#allocation11 + $0x48] sm:$0xff]
        %v1376 = vld [vmem:[#allocation11 + $0x50] sm:$0xff]
        %v1377 = vld [vmem:[#allocation11 + $0x58] sm:$0xff]
        %v1378 = vld [vmem:[#allocation11 + $0x60] sm:$0xff]
        %v1379 = vld [vmem:[#allocation11 + $0x68] sm:$0xff]
        %v1380 = vld [vmem:[#allocation11 + $0x70] sm:$0xff]
        %v1381 = vld [vmem:[#allocation11 + $0x78] sm:$0xff]
        %v1382 = vld [vmem:[#allocation11 + $0x80] sm:$0xff]
        %v1383 = vld [vmem:[#allocation11 + $0x88] sm:$0xff]
        %v1384 = vld [vmem:[#allocation11 + $0x90] sm:$0xff]
        %v1385 = vld [vmem:[#allocation11 + $0x98] sm:$0xff]
        %v1386 = vld [vmem:[#allocation11 + $0xa0] sm:$0xff]
        %v1387 = vld [vmem:[#allocation11 + $0xa8] sm:$0xff]
        %v1388 = vld [vmem:[#allocation11 + $0xb0] sm:$0xff]
        %v1389 = vld [vmem:[#allocation11 + $0xb8] sm:$0xff]
        %v1390 = vld [vmem:[#allocation11 + $0xc0] sm:$0xff]
        %v1391 = vld [vmem:[#allocation11 + $0xc8] sm:$0xff]
        %v1392 = vld [vmem:[#allocation11 + $0xd0] sm:$0xff]
        %v1393 = vld [vmem:[#allocation11 + $0xd8] sm:$0xff]
        %v1394 = vld [vmem:[#allocation11 + $0xe0] sm:$0xff]
        %v1395 = vld [vmem:[#allocation11 + $0xe8] sm:$0xff]
        %v1396 = vld [vmem:[#allocation11 + $0xf0] sm:$0xff]
        %v1397 = vld [vmem:[#allocation11 + $0xf8] sm:$0xff]
        %v1398 = vld [vmem:[%s12] sm:$0x1]
        %1399 = vmatprep.subr.mxu0 0.0
        %1400 = vmatpush1.msra.mxu0 %v1366
        %1401 = vmatprep.subr.mxu0 0.0
        %1402 = vmatpush1.msra.mxu0 %v1367
        %1403 = vmatprep.subr.mxu0 0.0
        %1404 = vmatpush1.msra.mxu0 %v1368
        %1405 = vmatprep.subr.mxu0 0.0
        %1406 = vmatpush1.msra.mxu0 %v1369
        %1407 = vmatprep.subr.mxu0 0.0
        %1408 = vmatpush1.msra.mxu0 %v1370
        %1409 = vmatprep.subr.mxu0 0.0
        %1410 = vmatpush1.msra.mxu0 %v1371
        %1411 = vmatprep.subr.mxu0 0.0
        %1412 = vmatpush1.msra.mxu0 %v1372
        %1413 = vmatprep.subr.mxu0 0.0
        %1414 = vmatpush1.msra.mxu0 %v1373
        %1415 = vmatprep.subr.mxu0 0.0
        %1416 = vmatpush1.msra.mxu0 %v1374
        %1417 = vmatprep.subr.mxu0 0.0
        %1418 = vmatpush1.msra.mxu0 %v1375
        %1419 = vmatprep.subr.mxu0 0.0
        %1420 = vmatpush1.msra.mxu0 %v1376
        %1421 = vmatprep.subr.mxu0 0.0
        %1422 = vmatpush1.msra.mxu0 %v1377
        %1423 = vmatprep.subr.mxu0 0.0
        %1424 = vmatpush1.msra.mxu0 %v1378
        %1425 = vmatprep.subr.mxu0 0.0
        %1426 = vmatpush1.msra.mxu0 %v1379
        %1427 = vmatprep.subr.mxu0 0.0
        %1428 = vmatpush1.msra.mxu0 %v1380
        %1429 = vmatprep.subr.mxu0 0.0
        %1430 = vmatpush1.msra.mxu0 %v1381
        %1431 = vmatprep.subr.mxu0 0.0
        %1432 = vmatpush1.msra.mxu0 %v1382
        %1433 = vmatprep.subr.mxu0 0.0
        %1434 = vmatpush1.msra.mxu0 %v1383
        %1435 = vmatprep.subr.mxu0 0.0
        %1436 = vmatpush1.msra.mxu0 %v1384
        %1437 = vmatprep.subr.mxu0 0.0
        %1438 = vmatpush1.msra.mxu0 %v1385
        %1439 = vmatprep.subr.mxu0 0.0
        %1440 = vmatpush1.msra.mxu0 %v1386
        %1441 = vmatprep.subr.mxu0 0.0
        %1442 = vmatpush1.msra.mxu0 %v1387
        %1443 = vmatprep.subr.mxu0 0.0
        %1444 = vmatpush1.msra.mxu0 %v1388
        %1445 = vmatprep.subr.mxu0 0.0
        %1446 = vmatpush1.msra.mxu0 %v1389
        %1447 = vmatprep.subr.mxu0 0.0
        %1448 = vmatpush1.msra.mxu0 %v1390
        %1449 = vmatprep.subr.mxu0 0.0
        %1450 = vmatpush1.msra.mxu0 %v1391
        %1451 = vmatprep.subr.mxu0 0.0
        %1452 = vmatpush1.msra.mxu0 %v1392
        %1453 = vmatprep.subr.mxu0 0.0
        %1454 = vmatpush1.msra.mxu0 %v1393
        %1455 = vmatprep.subr.mxu0 0.0
        %1456 = vmatpush1.msra.mxu0 %v1394
        %1457 = vmatprep.subr.mxu0 0.0
        %1458 = vmatpush1.msra.mxu0 %v1395
        %1459 = vmatprep.subr.mxu0 0.0
        %1460 = vmatpush1.msra.mxu0 %v1396
        %1461 = vmatprep.subr.mxu0 0.0
        %1462 = vmatpush1.msra.mxu0 %v1397
        %1463 = vmatprep.mubr.f32.mxu0 %v1365
        %1464 = vmatmul.mubr.f32.gmra.mrb[0].mxu0 %v1364
        %v1465 = vpop.f32.mrb[0].mxu0
        %v1466 = vadd.f32 %v1398, %v1465
        %v1467 = vpop.f32.mrb[0].mxu0
        %1468 = vdwg.mxu0
        %v1469 = vlaneseq
        %v1470 = vshrl.u32 %v1469, 7
        %v1471 = vsub.s32 0, %v1470
        %v1472 = vrot.slane %v1466, %v1471
        %v1473 = vadd.f32 %v913, %v1472
        %v1474 = vadd.f32 %v916, %v1472
        %v1475 = vadd.f32 %v921, %v1472
        %v1476 = vadd.f32 %v924, %v1472
        %v1477 = vadd.f32 %v929, %v1472
        %v1478 = vadd.f32 %v932, %v1472
        %v1479 = vadd.f32 %v937, %v1472
        %v1480 = vadd.f32 %v940, %v1472
        %v1481 = vtanh.pop %v1473
        %v1482 = vtanh.pop %v1474
        %v1483 = vtanh.pop %v1475
        %v1484 = vtanh.pop %v1476
        %v1485 = vtanh.pop %v1477
        %v1486 = vtanh.pop %v1478
        %v1487 = vtanh.pop %v1479
        %v1488 = vtanh.pop %v1480
        %v1489 = vadd.f32 %v1203, %v1466
        %v1490 = vtanh.pop %v1489
        %v1491 = vld [vmem:[%s13] sm:$0xff]
        %v1492 = vld [vmem:[%s13 + $0x8] sm:$0xff]
        %v1493 = vld [vmem:[%s13 + $0x10] sm:$0xff]
        %v1494 = vld [vmem:[%s13 + $0x18] sm:$0xff]
        %v1495 = vld [vmem:[%s13 + $0x20] sm:$0xff]
        %v1496 = vld [vmem:[%s13 + $0x28] sm:$0xff]
        %v1497 = vld [vmem:[%s13 + $0x30] sm:$0xff]
        %v1498 = vld [vmem:[%s13 + $0x38] sm:$0xff]
        %v1499 = vld [vmem:[%s13 + $0x40] sm:$0xff]
        %v1500 = vld [vmem:[%s13 + $0x48] sm:$0xff]
        %v1501 = vld [vmem:[%s13 + $0x50] sm:$0xff]
        %v1502 = vld [vmem:[%s13 + $0x58] sm:$0xff]
        %v1503 = vld [vmem:[%s13 + $0x60] sm:$0xff]
        %v1504 = vld [vmem:[%s13 + $0x68] sm:$0xff]
        %v1505 = vld [vmem:[%s13 + $0x70] sm:$0xff]
        %v1506 = vld [vmem:[%s13 + $0x78] sm:$0xff]
        %v1507 = vld [vmem:[#allocation2] sm:$0x1]
        %v1509 = vlaneseq
        %v1510 = vshrl.u32 %v1509, 7
        %v1511 = vsub.s32 0, %v1510
        %v1512 = vrot.slane %v1507, %v1511
        %1514 = vmatprep.subr.mxu0 0.0
        %1515 = vmatpush1.msra.mxu0 %v1491
        %1516 = vmatprep.subr.mxu0 0.0
        %1517 = vmatpush1.msra.mxu0 %v1492
        %1518 = vmatprep.subr.mxu0 0.0
        %1519 = vmatpush1.msra.mxu0 %v1493
        %1520 = vmatprep.subr.mxu0 0.0
        %1521 = vmatpush1.msra.mxu0 %v1494
        %1522 = vmatprep.subr.mxu0 0.0
        %1523 = vmatpush1.msra.mxu0 %v1495
        %1524 = vmatprep.subr.mxu0 0.0
        %1525 = vmatpush1.msra.mxu0 %v1496
        %1526 = vmatprep.subr.mxu0 0.0
        %1527 = vmatpush1.msra.mxu0 %v1497
        %1528 = vmatprep.subr.mxu0 0.0
        %1529 = vmatpush1.msra.mxu0 %v1498
        %1530 = vmatprep.subr.mxu0 0.0
        %1531 = vmatpush1.msra.mxu0 %v1499
        %1532 = vmatprep.subr.mxu0 0.0
        %1533 = vmatpush1.msra.mxu0 %v1500
        %1534 = vmatprep.subr.mxu0 0.0
        %1535 = vmatpush1.msra.mxu0 %v1501
        %1536 = vmatprep.subr.mxu0 0.0
        %1537 = vmatpush1.msra.mxu0 %v1502
        %1538 = vmatprep.subr.mxu0 0.0
        %1539 = vmatpush1.msra.mxu0 %v1503
        %1540 = vmatprep.subr.mxu0 0.0
        %1541 = vmatpush1.msra.mxu0 %v1504
        %1542 = vmatprep.subr.mxu0 0.0
        %1543 = vmatpush1.msra.mxu0 %v1505
        %1544 = vmatprep.subr.mxu0 0.0
        %1545 = vmatpush1.msra.mxu0 %v1506
        %1546 = vmatprep.subr.mxu0 0.0
        %1547 = vmatpush1.msra.mxu0 0.0
        %1548 = vmatprep.subr.mxu0 0.0
        %1549 = vmatpush1.msra.mxu0 0.0
        %1550 = vmatprep.subr.mxu0 0.0
        %1551 = vmatpush1.msra.mxu0 0.0
        %1552 = vmatprep.subr.mxu0 0.0
        %1553 = vmatpush1.msra.mxu0 0.0
        %1554 = vmatprep.subr.mxu0 0.0
        %1555 = vmatpush1.msra.mxu0 0.0
        %1556 = vmatprep.subr.mxu0 0.0
        %1557 = vmatpush1.msra.mxu0 0.0
        %1558 = vmatprep.subr.mxu0 0.0
        %1559 = vmatpush1.msra.mxu0 0.0
        %1560 = vmatprep.subr.mxu0 0.0
        %1561 = vmatpush1.msra.mxu0 0.0
        %1562 = vmatprep.subr.mxu0 0.0
        %1563 = vmatpush1.msra.mxu0 0.0
        %1564 = vmatprep.subr.mxu0 0.0
        %1565 = vmatpush1.msra.mxu0 0.0
        %1566 = vmatprep.subr.mxu0 0.0
        %1567 = vmatpush1.msra.mxu0 0.0
        %1568 = vmatprep.subr.mxu0 0.0
        %1569 = vmatpush1.msra.mxu0 0.0
        %1570 = vmatprep.subr.mxu0 0.0
        %1571 = vmatpush1.msra.mxu0 0.0
        %1572 = vmatprep.subr.mxu0 0.0
        %1573 = vmatpush1.msra.mxu0 0.0
        %1574 = vmatprep.subr.mxu0 0.0
        %1575 = vmatpush1.msra.mxu0 0.0
        %1576 = vmatprep.subr.mxu0 0.0
        %1577 = vmatpush1.msra.mxu0 0.0
        %1578 = vmatprep.mubr.f32.mxu0 0.0
        %1579 = vmatmul.mubr.f32.gmra.mrb[0].mxu0 %v1481
        %v1580 = vpop.f32.mrb[0].mxu0
        %v1581 = vadd.f32 %v1512, %v1580
        %v1582 = vpop.f32.mrb[0].mxu0
        %1583 = vmatprep.mubr.f32.mxu0 0.0
        %1584 = vmatmul.mubr.f32.gmra.mrb[0].mxu0 %v1482
        %v1585 = vpop.f32.mrb[0].mxu0
        %v1586 = vadd.f32 %v1512, %v1585
        %v1587 = vpop.f32.mrb[0].mxu0
        %1588 = vmatprep.mubr.f32.mxu0 0.0
        %1589 = vmatmul.mubr.f32.gmra.mrb[0].mxu0 %v1483
        %v1590 = vpop.f32.mrb[0].mxu0
        %v1591 = vadd.f32 %v1512, %v1590
        %v1592 = vpop.f32.mrb[0].mxu0
        %1593 = vmatprep.mubr.f32.mxu0 0.0
        %1594 = vmatmul.mubr.f32.gmra.mrb[0].mxu0 %v1484
        %v1595 = vpop.f32.mrb[0].mxu0
        %v1596 = vadd.f32 %v1512, %v1595
        %v1597 = vpop.f32.mrb[0].mxu0
        %1598 = vmatprep.mubr.f32.mxu0 0.0
        %1599 = vmatmul.mubr.f32.gmra.mrb[0].mxu0 %v1485
        %v1600 = vpop.f32.mrb[0].mxu0
        %v1601 = vadd.f32 %v1512, %v1600
        %v1602 = vpop.f32.mrb[0].mxu0
        %1603 = vmatprep.mubr.f32.mxu0 0.0
        %1604 = vmatmul.mubr.f32.gmra.mrb[0].mxu0 %v1486
        %v1605 = vpop.f32.mrb[0].mxu0
        %v1606 = vadd.f32 %v1512, %v1605
        %v1607 = vpop.f32.mrb[0].mxu0
        %1608 = vmatprep.mubr.f32.mxu0 0.0
        %1609 = vmatmul.mubr.f32.gmra.mrb[0].mxu0 %v1487
        %v1610 = vpop.f32.mrb[0].mxu0
        %v1611 = vadd.f32 %v1512, %v1610
        %v1612 = vpop.f32.mrb[0].mxu0
        %1613 = vmatprep.mubr.f32.mxu0 0.0
        %1614 = vmatmul.mubr.f32.gmra.mrb[0].mxu0 %v1488
        %v1615 = vpop.f32.mrb[0].mxu0
        %v1616 = vadd.f32 %v1512, %v1615
        %v1617 = vpop.f32.mrb[0].mxu0
        %1618 = vdwg.mxu0
        %1619 = vmatprep.subr.mxu0 0.0
        %1620 = vmatpush1.msra.mxu0 %v1491
        %1621 = vmatprep.subr.mxu0 0.0
        %1622 = vmatpush1.msra.mxu0 %v1492
        %1623 = vmatprep.subr.mxu0 0.0
        %1624 = vmatpush1.msra.mxu0 %v1493
        %1625 = vmatprep.subr.mxu0 0.0
        %1626 = vmatpush1.msra.mxu0 %v1494
        %1627 = vmatprep.subr.mxu0 0.0
        %1628 = vmatpush1.msra.mxu0 %v1495
        %1629 = vmatprep.subr.mxu0 0.0
        %1630 = vmatpush1.msra.mxu0 %v1496
        %1631 = vmatprep.subr.mxu0 0.0
        %1632 = vmatpush1.msra.mxu0 %v1497
        %1633 = vmatprep.subr.mxu0 0.0
        %1634 = vmatpush1.msra.mxu0 %v1498
        %1635 = vmatprep.subr.mxu0 0.0
        %1636 = vmatpush1.msra.mxu0 %v1499
        %1637 = vmatprep.subr.mxu0 0.0
        %1638 = vmatpush1.msra.mxu0 %v1500
        %1639 = vmatprep.subr.mxu0 0.0
        %1640 = vmatpush1.msra.mxu0 %v1501
        %1641 = vmatprep.subr.mxu0 0.0
        %1642 = vmatpush1.msra.mxu0 %v1502
        %1643 = vmatprep.subr.mxu0 0.0
        %1644 = vmatpush1.msra.mxu0 %v1503
        %1645 = vmatprep.subr.mxu0 0.0
        %1646 = vmatpush1.msra.mxu0 %v1504
        %1647 = vmatprep.subr.mxu0 0.0
        %1648 = vmatpush1.msra.mxu0 %v1505
        %1649 = vmatprep.subr.mxu0 0.0
        %1650 = vmatpush1.msra.mxu0 %v1506
        %1651 = vmatprep.subr.mxu0 0.0
        %1652 = vmatpush1.msra.mxu0 0.0
        %1653 = vmatprep.subr.mxu0 0.0
        %1654 = vmatpush1.msra.mxu0 0.0
        %1655 = vmatprep.subr.mxu0 0.0
        %1656 = vmatpush1.msra.mxu0 0.0
        %1657 = vmatprep.subr.mxu0 0.0
        %1658 = vmatpush1.msra.mxu0 0.0
        %1659 = vmatprep.subr.mxu0 0.0
        %1660 = vmatpush1.msra.mxu0 0.0
        %1661 = vmatprep.subr.mxu0 0.0
        %1662 = vmatpush1.msra.mxu0 0.0
        %1663 = vmatprep.subr.mxu0 0.0
        %1664 = vmatpush1.msra.mxu0 0.0
        %1665 = vmatprep.subr.mxu0 0.0
        %1666 = vmatpush1.msra.mxu0 0.0
        %1667 = vmatprep.subr.mxu0 0.0
        %1668 = vmatpush1.msra.mxu0 0.0
        %1669 = vmatprep.subr.mxu0 0.0
        %1670 = vmatpush1.msra.mxu0 0.0
        %1671 = vmatprep.subr.mxu0 0.0
        %1672 = vmatpush1.msra.mxu0 0.0
        %1673 = vmatprep.subr.mxu0 0.0
        %1674 = vmatpush1.msra.mxu0 0.0
        %1675 = vmatprep.subr.mxu0 0.0
        %1676 = vmatpush1.msra.mxu0 0.0
        %1677 = vmatprep.subr.mxu0 0.0
        %1678 = vmatpush1.msra.mxu0 0.0
        %1679 = vmatprep.subr.mxu0 0.0
        %1680 = vmatpush1.msra.mxu0 0.0
        %1681 = vmatprep.subr.mxu0 0.0
        %1682 = vmatpush1.msra.mxu0 0.0
        %1683 = vmatprep.mubr.f32.mxu0 0.0
        %1684 = vmatmul.mubr.f32.gmra.mrb[0].mxu0 %v1490
        %v1685 = vpop.f32.mrb[0].mxu0
        %v1686 = vadd.f32 %v1507, %v1685
        %v1687 = vpop.f32.mrb[0].mxu0
        %1688 = vdwg.mxu0
        %vm1689 = vcmask 7168
        %v1690 = vsel %vm1689, %v1581, -inf
        %v1691 = vsel %vm1689, %v1586, -inf
        %v1692 = vsel %vm1689, %v1591, -inf
        %v1693 = vsel %vm1689, %v1596, -inf
        %v1694 = vsel %vm1689, %v1601, -inf
        %v1695 = vmax.f32 %v1690, %v1694
        %v1696 = vsel %vm1689, %v1606, -inf
        %v1697 = vmax.f32 %v1691, %v1696
        %v1698 = vsel %vm1689, %v1611, -inf
        %v1699 = vmax.f32 %v1692, %v1698
        %v1700 = vsel %vm1689, %v1616, -inf
        %v1701 = vmax.f32 %v1693, %v1700
        %v1702 = vmax.f32 %v1695, %v1697
        %v1703 = vmax.f32 %v1699, %v1701
        %v1704 = vmax.f32 %v1702, %v1703
        %v1705 = vrot.slane %v1704, 4
        %v1706 = vmax.f32 %v1704, %v1705
        %v1707 = vrot.slane %v1706, 2
        %v1708 = vmax.f32 %v1706, %v1707
        %v1709 = vrot.slane %v1708, 1
        %v1710 = vmax.f32 %v1708, %v1709
        %v1711 = vmax.f32 %v1710, %v1686
        %v1712 = vlaneseq
        %v1713 = vshrl.u32 %v1712, 7
        %v1714 = vsub.s32 0, %v1713
        %v1715 = vrot.slane %v1711, %v1714
        %v1716 = vsub.f32 %v1581, %v1715
        %v1717 = vsub.f32 %v1586, %v1715
        %v1718 = vsub.f32 %v1591, %v1715
        %v1719 = vsub.f32 %v1596, %v1715
        %v1720 = vsub.f32 %v1601, %v1715
        %v1721 = vsub.f32 %v1606, %v1715
        %v1722 = vsub.f32 %v1611, %v1715
        %v1723 = vsub.f32 %v1616, %v1715
        %v1724 = vmul.f32 %v1716, 1.442695
        %v1725 = vpow.pop %v1724
        %v1726 = vmul.f32 %v1717, 1.442695
        %v1727 = vpow.pop %v1726
        %v1728 = vmul.f32 %v1718, 1.442695
        %v1729 = vpow.pop %v1728
        %v1730 = vmul.f32 %v1719, 1.442695
        %v1731 = vpow.pop %v1730
        %v1732 = vmul.f32 %v1720, 1.442695
        %v1733 = vpow.pop %v1732
        %v1734 = vmul.f32 %v1721, 1.442695
        %v1735 = vpow.pop %v1734
        %v1736 = vmul.f32 %v1722, 1.442695
        %v1737 = vpow.pop %v1736
        %v1738 = vmul.f32 %v1723, 1.442695
        %v1739 = vpow.pop %v1738
        %v1740 = vsub.f32 %v1686, %v1711
        %v1741 = vmul.f32 %v1740, 1.442695
        %v1742 = vpow.pop %v1741
        %v1743 = vsel %vm1689, %v1725, 0.0
        %v1744 = vsel %vm1689, %v1727, 0.0
        %v1745 = vadd.f32 %v1743, %v1744
        %v1746 = vsel %vm1689, %v1729, 0.0
        %v1747 = vadd.f32 %v1745, %v1746
        %v1748 = vsel %vm1689, %v1731, 0.0
        %v1749 = vadd.f32 %v1747, %v1748
        %v1750 = vsel %vm1689, %v1733, 0.0
        %v1751 = vadd.f32 %v1749, %v1750
        %v1752 = vsel %vm1689, %v1735, 0.0
        %v1753 = vadd.f32 %v1751, %v1752
        %v1754 = vsel %vm1689, %v1737, 0.0
        %v1755 = vadd.f32 %v1753, %v1754
        %v1756 = vsel %vm1689, %v1739, 0.0
        %v1757 = vadd.f32 %v1755, %v1756
        %v1758 = vrot.slane %v1757, 4
        %v1759 = vadd.f32 %v1757, %v1758
        %v1760 = vrot.slane %v1759, 2
        %v1761 = vadd.f32 %v1759, %v1760
        %v1762 = vrot.slane %v1761, 1
        %v1763 = vadd.f32 %v1761, %v1762
        %v1764 = vadd.f32 %v1763, %v1742
        %v1765 = vrcp.pop %v1764
        %v1766 = vmul.f32 1.0, %v1765
        %v1767 = vlaneseq
        %v1768 = vshrl.u32 %v1767, 7
        %v1769 = vsub.s32 0, %v1768
        %v1770 = vrot.slane %v1766, %v1769
        %v1771 = vmul.f32 %v1725, %v1770
        %v1772 = vmul.f32 %v1727, %v1770
        %v1773 = vmul.f32 %v1729, %v1770
        %v1774 = vmul.f32 %v1731, %v1770
        %v1775 = vmul.f32 %v1733, %v1770
        %v1776 = vmul.f32 %v1735, %v1770
        %v1777 = vmul.f32 %v1737, %v1770
        %v1778 = vmul.f32 %v1739, %v1770
        %v1779 = vmul.f32 %v1742, %v1766
        %1781 = vset.pattern.permute.xlu0 0
        %1782 = vperm.xlu0 %1781, %v1771
        %v1783 = vpop.permute.xlu0 %1782
        %1786 = vset.pattern.permute.xlu0 0
        %1787 = vperm.xlu0 %1786, %v1772
        %v1788 = vpop.permute.xlu0 %1787
        %1791 = vset.pattern.permute.xlu0 0
        %1792 = vperm.xlu0 %1791, %v1773
        %v1793 = vpop.permute.xlu0 %1792
        %1796 = vset.pattern.permute.xlu0 0
        %1797 = vperm.xlu0 %1796, %v1774
        %v1798 = vpop.permute.xlu0 %1797
        %1801 = vset.pattern.permute.xlu0 0
        %1802 = vperm.xlu0 %1801, %v1775
        %v1803 = vpop.permute.xlu0 %1802
        %1806 = vset.pattern.permute.xlu0 0
        %1807 = vperm.xlu0 %1806, %v1776
        %v1808 = vpop.permute.xlu0 %1807
        %1811 = vset.pattern.permute.xlu0 0
        %1812 = vperm.xlu0 %1811, %v1777
        %v1813 = vpop.permute.xlu0 %1812
        %1816 = vset.pattern.permute.xlu0 0
        %1817 = vperm.xlu0 %1816, %v1778
        %v1818 = vpop.permute.xlu0 %1817
        %v1820 = vmul.f32 %v717, %v1783
        %v1821 = vmul.f32 %v718, %v1783
        %v1822 = vmul.f32 %v719, %v1788
        %v1823 = vmul.f32 %v720, %v1788
        %v1824 = vmul.f32 %v721, %v1793
        %v1825 = vmul.f32 %v722, %v1793
        %v1826 = vmul.f32 %v723, %v1798
        %v1827 = vmul.f32 %v724, %v1798
        %v1828 = vmul.f32 %v725, %v1803
        %v1829 = vmul.f32 %v726, %v1803
        %v1830 = vmul.f32 %v727, %v1808
        %v1831 = vmul.f32 %v728, %v1808
        %v1832 = vmul.f32 %v729, %v1813
        %v1833 = vmul.f32 %v730, %v1813
        %v1834 = vmul.f32 %v731, %v1818
        %v1835 = vmul.f32 %v732, %v1818
        %v1836 = vadd.f32 %v1820, %v1822
        %v1837 = vadd.f32 %v1836, %v1824
        %v1838 = vadd.f32 %v1837, %v1826
        %v1839 = vadd.f32 %v1838, %v1828
        %v1840 = vadd.f32 %v1839, %v1830
        %v1841 = vadd.f32 %v1840, %v1832
        %v1842 = vadd.f32 %v1841, %v1834
        %v1843 = vrot.slane %v1842, 4
        %v1844 = vadd.f32 %v1842, %v1843
        %v1845 = vrot.slane %v1844, 2
        %v1846 = vadd.f32 %v1844, %v1845
        %v1847 = vrot.slane %v1846, 1
        %v1848 = vadd.f32 %v1846, %v1847
        %v1849 = vadd.f32 %v1821, %v1823
        %v1850 = vadd.f32 %v1849, %v1825
        %v1851 = vadd.f32 %v1850, %v1827
        %v1852 = vadd.f32 %v1851, %v1829
        %v1853 = vadd.f32 %v1852, %v1831
        %v1854 = vadd.f32 %v1853, %v1833
        %v1855 = vadd.f32 %v1854, %v1835
        %v1856 = vrot.slane %v1855, 4
        %v1857 = vadd.f32 %v1855, %v1856
        %v1858 = vrot.slane %v1857, 2
        %v1859 = vadd.f32 %v1857, %v1858
        %v1860 = vrot.slane %v1859, 1
        %v1861 = vadd.f32 %v1859, %v1860
        %1863 = vset.pattern.permute.xlu0 0
        %1864 = vperm.xlu0 %1863, %v1779
        %v1865 = vpop.permute.xlu0 %1864
        %v1867 = vmul.f32 %v1865, %v1101
        %v1868 = vmul.f32 %v1865, %v1102
        %v1869 = vadd.f32 %v1848, %v1867
        %v1870 = vadd.f32 %v1861, %v1868
        %v1871 = vadd.f32 %v1869, %v1364
        %v1872 = vadd.f32 %v1870, %v1365
        %v1873 = vld [vmem:[#allocation12] sm:$0xff]
        %v1874 = vld [vmem:[#allocation12 + $0x8] sm:$0xff]
        %v1875 = vld [vmem:[#allocation12 + $0x10] sm:$0xff]
        %v1876 = vld [vmem:[#allocation12 + $0x18] sm:$0xff]
        %v1877 = vld [vmem:[#allocation12 + $0x20] sm:$0xff]
        %v1878 = vld [vmem:[#allocation12 + $0x28] sm:$0xff]
        %v1879 = vld [vmem:[#allocation12 + $0x30] sm:$0xff]
        %v1880 = vld [vmem:[#allocation12 + $0x38] sm:$0xff]
        %v1881 = vld [vmem:[#allocation12 + $0x40] sm:$0xff]
        %v1882 = vld [vmem:[#allocation12 + $0x48] sm:$0xff]
        %v1883 = vld [vmem:[#allocation12 + $0x50] sm:$0xff]
        %v1884 = vld [vmem:[#allocation12 + $0x58] sm:$0xff]
        %v1885 = vld [vmem:[#allocation12 + $0x60] sm:$0xff]
        %v1886 = vld [vmem:[#allocation12 + $0x68] sm:$0xff]
        %v1887 = vld [vmem:[#allocation12 + $0x70] sm:$0xff]
        %v1888 = vld [vmem:[#allocation12 + $0x78] sm:$0xff]
        %v1889 = vld [vmem:[#allocation12 + $0x80] sm:$0xff]
        %v1890 = vld [vmem:[#allocation12 + $0x88] sm:$0xff]
        %v1891 = vld [vmem:[#allocation12 + $0x90] sm:$0xff]
        %v1892 = vld [vmem:[#allocation12 + $0x98] sm:$0xff]
        %v1893 = vld [vmem:[#allocation12 + $0xa0] sm:$0xff]
        %v1894 = vld [vmem:[#allocation12 + $0xa8] sm:$0xff]
        %v1895 = vld [vmem:[#allocation12 + $0xb0] sm:$0xff]
        %v1896 = vld [vmem:[#allocation12 + $0xb8] sm:$0xff]
        %v1897 = vld [vmem:[#allocation12 + $0xc0] sm:$0xff]
        %v1898 = vld [vmem:[#allocation12 + $0xc8] sm:$0xff]
        %v1899 = vld [vmem:[#allocation12 + $0xd0] sm:$0xff]
        %v1900 = vld [vmem:[#allocation12 + $0xd8] sm:$0xff]
        %v1901 = vld [vmem:[#allocation12 + $0xe0] sm:$0xff]
        %v1902 = vld [vmem:[#allocation12 + $0xe8] sm:$0xff]
        %v1903 = vld [vmem:[#allocation12 + $0xf0] sm:$0xff]
        %v1904 = vld [vmem:[#allocation12 + $0xf8] sm:$0xff]
        %v1905 = vld [vmem:[#allocation12 + $0x100] sm:$0xff]
        %v1906 = vld [vmem:[#allocation12 + $0x108] sm:$0xff]
        %v1907 = vld [vmem:[#allocation12 + $0x110] sm:$0xff]
        %v1908 = vld [vmem:[#allocation12 + $0x118] sm:$0xff]
        %v1909 = vld [vmem:[#allocation12 + $0x120] sm:$0xff]
        %v1910 = vld [vmem:[#allocation12 + $0x128] sm:$0xff]
        %v1911 = vld [vmem:[#allocation12 + $0x130] sm:$0xff]
        %v1912 = vld [vmem:[#allocation12 + $0x138] sm:$0xff]
        %v1913 = vld [vmem:[#allocation12 + $0x140] sm:$0xff]
        %v1914 = vld [vmem:[#allocation12 + $0x148] sm:$0xff]
        %v1915 = vld [vmem:[#allocation12 + $0x150] sm:$0xff]
        %v1916 = vld [vmem:[#allocation12 + $0x158] sm:$0xff]
        %v1917 = vld [vmem:[#allocation12 + $0x160] sm:$0xff]
        %v1918 = vld [vmem:[#allocation12 + $0x168] sm:$0xff]
        %v1919 = vld [vmem:[#allocation12 + $0x170] sm:$0xff]
        %v1920 = vld [vmem:[#allocation12 + $0x178] sm:$0xff]
        %v1921 = vld [vmem:[#allocation12 + $0x180] sm:$0xff]
        %v1922 = vld [vmem:[#allocation12 + $0x188] sm:$0xff]
        %v1923 = vld [vmem:[#allocation12 + $0x190] sm:$0xff]
        %v1924 = vld [vmem:[#allocation12 + $0x198] sm:$0xff]
        %v1925 = vld [vmem:[#allocation12 + $0x1a0] sm:$0xff]
        %v1926 = vld [vmem:[#allocation12 + $0x1a8] sm:$0xff]
        %v1927 = vld [vmem:[#allocation12 + $0x1b0] sm:$0xff]
        %v1928 = vld [vmem:[#allocation12 + $0x1b8] sm:$0xff]
        %v1929 = vld [vmem:[#allocation12 + $0x1c0] sm:$0xff]
        %v1930 = vld [vmem:[#allocation12 + $0x1c8] sm:$0xff]
        %v1931 = vld [vmem:[#allocation12 + $0x1d0] sm:$0xff]
        %v1932 = vld [vmem:[#allocation12 + $0x1d8] sm:$0xff]
        %v1933 = vld [vmem:[#allocation12 + $0x1e0] sm:$0xff]
        %v1934 = vld [vmem:[#allocation12 + $0x1e8] sm:$0xff]
        %v1935 = vld [vmem:[#allocation12 + $0x1f0] sm:$0xff]
        %v1936 = vld [vmem:[#allocation12 + $0x1f8] sm:$0xff]
        %v1937 = vld [vmem:[%s16] sm:$0x3]
        %v1939 = vlaneseq
        %v1940 = vshrl.u32 %v1939, 7
        %v1941 = vsub.s32 0, %v1940
        %v1942 = vrot.slane %v1937, %v1941
        %v1943 = vlaneseq
        %v1944 = vshrl.u32 %v1943, 7
        %v1945 = vsub.s32 1, %v1944
        %v1946 = vrot.slane %v1937, %v1945
        %1949 = vmatprep.subr.mxu0 %v1874
        %1950 = vmatpush1.msra.mxu0 %v1873
        %1951 = vmatprep.subr.mxu0 %v1876
        %1952 = vmatpush1.msra.mxu0 %v1875
        %1953 = vmatprep.subr.mxu0 %v1878
        %1954 = vmatpush1.msra.mxu0 %v1877
        %1955 = vmatprep.subr.mxu0 %v1880
        %1956 = vmatpush1.msra.mxu0 %v1879
        %1957 = vmatprep.subr.mxu0 %v1882
        %1958 = vmatpush1.msra.mxu0 %v1881
        %1959 = vmatprep.subr.mxu0 %v1884
        %1960 = vmatpush1.msra.mxu0 %v1883
        %1961 = vmatprep.subr.mxu0 %v1886
        %1962 = vmatpush1.msra.mxu0 %v1885
        %1963 = vmatprep.subr.mxu0 %v1888
        %1964 = vmatpush1.msra.mxu0 %v1887
        %1965 = vmatprep.subr.mxu0 %v1890
        %1966 = vmatpush1.msra.mxu0 %v1889
        %1967 = vmatprep.subr.mxu0 %v1892
        %1968 = vmatpush1.msra.mxu0 %v1891
        %1969 = vmatprep.subr.mxu0 %v1894
        %1970 = vmatpush1.msra.mxu0 %v1893
        %1971 = vmatprep.subr.mxu0 %v1896
        %1972 = vmatpush1.msra.mxu0 %v1895
        %1973 = vmatprep.subr.mxu0 %v1898
        %1974 = vmatpush1.msra.mxu0 %v1897
        %1975 = vmatprep.subr.mxu0 %v1900
        %1976 = vmatpush1.msra.mxu0 %v1899
        %1977 = vmatprep.subr.mxu0 %v1902
        %1978 = vmatpush1.msra.mxu0 %v1901
        %1979 = vmatprep.subr.mxu0 %v1904
        %1980 = vmatpush1.msra.mxu0 %v1903
        %1981 = vmatprep.subr.mxu0 %v1906
        %1982 = vmatpush1.msra.mxu0 %v1905
        %1983 = vmatprep.subr.mxu0 %v1908
        %1984 = vmatpush1.msra.mxu0 %v1907
        %1985 = vmatprep.subr.mxu0 %v1910
        %1986 = vmatpush1.msra.mxu0 %v1909
        %1987 = vmatprep.subr.mxu0 %v1912
        %1988 = vmatpush1.msra.mxu0 %v1911
        %1989 = vmatprep.subr.mxu0 %v1914
        %1990 = vmatpush1.msra.mxu0 %v1913
        %1991 = vmatprep.subr.mxu0 %v1916
        %1992 = vmatpush1.msra.mxu0 %v1915
        %1993 = vmatprep.subr.mxu0 %v1918
        %1994 = vmatpush1.msra.mxu0 %v1917
        %1995 = vmatprep.subr.mxu0 %v1920
        %1996 = vmatpush1.msra.mxu0 %v1919
        %1997 = vmatprep.subr.mxu0 %v1922
        %1998 = vmatpush1.msra.mxu0 %v1921
        %1999 = vmatprep.subr.mxu0 %v1924
        %2000 = vmatpush1.msra.mxu0 %v1923
        %2001 = vmatprep.subr.mxu0 %v1926
        %2002 = vmatpush1.msra.mxu0 %v1925
        %2003 = vmatprep.subr.mxu0 %v1928
        %2004 = vmatpush1.msra.mxu0 %v1927
        %2005 = vmatprep.subr.mxu0 %v1930
        %2006 = vmatpush1.msra.mxu0 %v1929
        %2007 = vmatprep.subr.mxu0 %v1932
        %2008 = vmatpush1.msra.mxu0 %v1931
        %2009 = vmatprep.subr.mxu0 %v1934
        %2010 = vmatpush1.msra.mxu0 %v1933
        %2011 = vmatprep.subr.mxu0 %v1936
        %2012 = vmatpush1.msra.mxu0 %v1935
        %2013 = vmatprep.mubr.f32.mxu0 %v1872
        %2014 = vmatmul.mubr.f32.gmra.mrb[0].mxu0 %v1871
        %v2015 = vpop.f32.mrb[0].mxu0
        %v2016 = vadd.f32 %v1942, %v2015
        %v2017 = vpop.f32.mrb[0].mxu0
        %v2018 = vadd.f32 %v1946, %v2017
        %2019 = vdwg.mxu0
        %v2020 = vtanh.pop %v2016
        %v2021 = vtanh.pop %v2018
        %v2024 = vcombine.low %v2020, %v2021
        %v2026 = vunpack.c.l.s4 1966171168
        %v2027 = vunpack.c.0.s8 %v2026
        %v2028 = vlaneseq
        %v2029 = vshrl.u32 %v2028, 7
        %v2030 = vsub.s32 %v2027, %v2029
        %v2031 = vrot.slane %v2024, %v2030
        %v2033 = vunpack.c.l.s4 1966171168
        %v2034 = vunpack.c.0.s8 %v2033
        %v2035 = vlaneseq
        %v2036 = vshrl.u32 %v2035, 7
        %v2037 = vsub.s32 %v2034, %v2036
        %v2038 = vrot.slane %v2031, %v2037
        %v2040 = vlaneseq
        %vm2041 = vcmp.ge.s32.totalorder %v2040, 0
        %vm2042 = vcmp.lt.s32.totalorder %v2040, 256
        %vm2043 = vmand %vm2041, %vm2042
        %2044 = vst.msk [vmem:[%s695] sm:$0x3] %vm2043, %v2038
        %2045 = vst.msk [vmem:[%s715] sm:$0xff] %vm1689, %v1771
        %2046 = vst.msk [vmem:[%s715 + $0x8] sm:$0xff] %vm1689, %v1772
        %2047 = vst.msk [vmem:[%s715 + $0x10] sm:$0xff] %vm1689, %v1773
        %2048 = vst.msk [vmem:[%s715 + $0x18] sm:$0xff] %vm1689, %v1774
        %2049 = vst.msk [vmem:[%s715 + $0x20] sm:$0xff] %vm1689, %v1775
        %2050 = vst.msk [vmem:[%s715 + $0x28] sm:$0xff] %vm1689, %v1776
        %2051 = vst.msk [vmem:[%s715 + $0x30] sm:$0xff] %vm1689, %v1777
        %2052 = vst.msk [vmem:[%s715 + $0x38] sm:$0xff] %vm1689, %v1778
        %vm2053 = vcmask 0
        %2054 = vst.msk [vmem:[%s715 + $0x40] sm:$0x1] %vm2053, %v1779
        %s2055 = sand.u32 %s421, 1
        %s2056 = scalar_lea.sflag [#allocation5], %s2055
        %s2057 = sand.u32 %s421, 1
        %s2058 = smul.addr %s2057, 2
        %s2059 = scalar_lea.vmem [#allocation14], %s2058
        %p2060 = scmp.lt.s32.totalorder %s41, 3
        %s2061 = scalar_select %p2060, %s41, 3
        %s2062 = smul.addr %s2061, 9
        %s2063 = smul.addr %s2062, 8
        %s2064 = scalar_lea.vmem %s18, %s2063
        // Predicated region
        $region113: #{tpu_custom_call.1} parent=87 // pred_check
          %p2065 = pneg %p431
        $region114: #{tpu_custom_call.1} parent=87 // pred_check_branch
          %2067 = sbr.rel (%p2065) target = $region116
        $region115: #{tpu_custom_call.1} parent=87 // pred_region
          %s2069 = ssub.s32 32, 32
          %2070 = vsyncadd %s2056, %s2069
          %s2071 = smul.addr %s41, 2
          %s2072 = smul.addr %s2071, 16
          %s2073 = scalar_lea.hbm %s17, %s2072
          %s2075 = sshll.u32 %s2059, 4
          %s2076 = int_to_ptr.vmem [resolvable:$true] %s2075
          %2078 = dma.vmem_to_hbm [thread:$0]  %s2076, 32, %s2073, %s2056
        $region116: #{tpu_custom_call.1} parent=87 // pred_fallthru
          _
        // Predicated region
        $region117: #{tpu_custom_call.1} parent=87 // pred_check
          %p2079 = pneg %p457
        $region118: #{tpu_custom_call.1} parent=87 // pred_check_branch
          %2081 = sbr.rel (%p2079) target = $region120
        $region119: #{tpu_custom_call.1} parent=87 // pred_region
          _
        $region120: #{tpu_custom_call.1} parent=87 // pred_fallthru
          _
      $region88: #{tpu_custom_call.1} parent=5 // pred_fallthru
        _
      %p2082 = scmp.le.s32.totalorder 2, %s36
      // Predicated region
      $region121: #{tpu_custom_call.1} parent=5 // pred_check
        %p2083 = pneg %p2082
      $region122: #{tpu_custom_call.1} parent=5 // pred_check_branch
        %2085 = sbr.rel (%p2083) target = $region124
      $region123: #{tpu_custom_call.1} parent=5 // pred_region
        %s2086 = ssub.s32 %s36, 2
        // Predicated region
        $region125: #{tpu_custom_call.1} parent=123 // pred_check
          %p2087 = pneg %p437
        $region126: #{tpu_custom_call.1} parent=123 // pred_check_branch
          %2089 = sbr.rel (%p2087) target = $region128
        $region127: #{tpu_custom_call.1} parent=123 // pred_region
          %s2090 = sand.u32 %s422, 1
          %s2091 = scalar_lea.sflag [#allocation5], %s2090
          %s2092 = sand.u32 %s422, 1
          %s2093 = smul.addr %s2092, 2
          %s2094 = scalar_lea.vmem [#allocation14], %s2093
          %2095 = dma.done %s2091, 32
        $region128: #{tpu_custom_call.1} parent=123 // pred_fallthru
          _
        // Predicated region
        $region129: #{tpu_custom_call.1} parent=123 // pred_check
          %p2096 = pneg %p463
        $region130: #{tpu_custom_call.1} parent=123 // pred_check_branch
          %2098 = sbr.rel (%p2096) target = $region132
        $region131: #{tpu_custom_call.1} parent=123 // pred_region
          %p2099 = scmp.lt.s32.totalorder %s42, 3
          %s2100 = scalar_select %p2099, %s42, 3
          %s2101 = smul.addr %s2100, 9
          %s2102 = smul.addr %s2101, 8
          %s2103 = scalar_lea.vmem %s18, %s2102
        $region132: #{tpu_custom_call.1} parent=123 // pred_fallthru
          _
      $region124: #{tpu_custom_call.1} parent=5 // pred_fallthru
        _
    $region6: #{tpu_custom_call.1} parent=1 // loop_footer
      %s40 = sadd.s32 1, %s36
    $region7: #{tpu_custom_call.1} parent=1 // loop_footer_branch
      %35 = sbr.rel target = $region3
    $region8: #{tpu_custom_call.1} parent=1 // loop_exit
      _
    %2104 = vsyncpa [#allocation4], 1
    %s2105 = scalar_lea.sflag [#allocation4], 1
    %2106 = vsyncpa %s2105, 1
    %2107 = vsyncpa [#allocation7], 1
    %2108 = vsyncpa [#allocation10], 1
    %2109 = vsyncpa [#allocation13], 1
    %2110 = vsyncpa [#allocation5], 1
    %s2111 = scalar_lea.sflag [#allocation5], 1
    %2112 = vsyncpa %s2111, 1

</llo_original>
